<compile_context>
chip_gen: v5e
topology: v5e:2x2
jax: 0.10.0
libtpu: 0.0.40
codegen_flags: <defaults>
</compile_context>

<pallas_src>
import functools

import jax
import jax.numpy as jnp
import numpy as np
from jax.experimental import pallas as pl
from jax.experimental.pallas import tpu as pltpu


_LN_EPS = 1e-5  # torch nn.LayerNorm default


# ----------------------------------------------------------------------------- helpers
def _round_up(v, m):
    return ((v + m - 1) // m) * m


def _tpu_profile():
    """(vmem_capacity_bytes, is_v7x_like, has_bf16_vpu) — best-effort, safe defaults."""
    kind = ""
    try:
        dev = jax.devices()[0]
        if dev.platform == "tpu":
            kind = dev.device_kind.lower()
    except Exception:
        pass
    vmem_cap = 64 * 1024 * 1024  # conservative (v7x-sized) default if the query fails
    try:
        info = pltpu.get_tpu_info()
        for attr in ("vmem_capacity_bytes", "vmem_bytes", "vmem_size_bytes"):
            v = getattr(info, attr, None)
            if v:
                vmem_cap = int(v)
                break
    except Exception:
        pass
    is_v7 = ("v7" in kind) or ("7x" in kind)
    has_bf16_vpu = is_v7 or ("v6" in kind)  # v5e and earlier: no bf16 VALU/EUP
    return vmem_cap, is_v7, has_bf16_vpu


def _const_block_spec(shape, index_map, single_buffer):
    """BlockSpec for a grid-invariant block; single-buffer it when supported.

    Grid-invariant blocks (weights / LN params / biases in the weight-resident regime)
    gain nothing from double-buffering — Buffered(1) halves their VMEM footprint."""
    if single_buffer and hasattr(pl, "Buffered"):
        try:
            return pl.BlockSpec(shape, index_map, pipeline_mode=pl.Buffered(1))
        except TypeError:  # older BlockSpec signature without pipeline_mode
            pass
    return pl.BlockSpec(shape, index_map)


def _layernorm_f32(x_f32, g, b):
    mean = jnp.mean(x_f32, axis=-1, keepdims=True)
    xc = x_f32 - mean
    var = jnp.mean(xc * xc, axis=-1, keepdims=True)
    return xc * jax.lax.rsqrt(var + _LN_EPS) * g + b


def _mish_to_bf16(h_f32, compute_dtype):
    """Mish(h) = h * tanh(softplus(h)) via tanh(log1p(e^h)) = 1 - 2/((1+e^h)^2 + 1).

    One EUP exp (+ one approx reciprocal on the f32 path) instead of exp+log1p+tanh.
    The bf16 path (v6e/v7x bf16 VPU/EUP) halves VALU/EUP op count; output is the bf16
    MXU operand of the second matmul either way."""
    h = h_f32.astype(compute_dtype)
    e = jnp.exp(jnp.minimum(h, 20.0))  # 20 = torch softplus threshold; above, t == 1
    u = 1.0 + e
    if np.dtype(compute_dtype) == np.dtype(np.float32):
        t = 1.0 - 2.0 * pl.reciprocal(u * u + 1.0, approx=True)
    else:
        t = 1.0 - 2.0 / (u * u + 1.0)
    return (h * t).astype(jnp.bfloat16)


# ----------------------------------------------------------------------------- kernels
def _resident_kernel(x_ref, g_ref, beta_ref, w1_ref, b1_ref, w2_ref, b2_ref, o_ref,
                     *, mish_dtype):
    # Dropout(0.1): identity in eval mode.
    x = x_ref[...].astype(jnp.float32)                              # (tb, H)
    xn = _layernorm_f32(x, g_ref[...], beta_ref[...]).astype(jnp.bfloat16)
    h = jnp.dot(xn, w1_ref[...], preferred_element_type=jnp.float32) + b1_ref[...]
    h = _mish_to_bf16(h, mish_dtype)
    y = jnp.dot(h, w2_ref[...], preferred_element_type=jnp.float32)
    o_ref[...] = (x + y + b2_ref[...]).astype(o_ref.dtype)          # bias + residual


def _split_kernel(x_ref, g_ref, beta_ref, w1_ref, b1_ref, w2_ref, b2_ref,
                  o_ref, xn_ref, acc_ref, *, mish_dtype):
    j = pl.program_id(1)  # 4H-slice (reduction) step, innermost grid axis

    @pl.when(j == 0)
    def _init():
        # LayerNorm once per batch tile (f32), cached as the bf16 MXU lhs for all j.
        x = x_ref[...].astype(jnp.float32)
        xn_ref[...] = _layernorm_f32(x, g_ref[...], beta_ref[...]).astype(jnp.bfloat16)
        acc_ref[...] = jnp.zeros_like(acc_ref)

    # Linear(H -> 4H) for this 4H slice, then Mish, then accumulate Linear(4H -> H).
    h = jnp.dot(xn_ref[...], w1_ref[...], preferred_element_type=jnp.float32) + b1_ref[...]
    h = _mish_to_bf16(h, mish_dtype)
    acc_ref[...] += jnp.dot(h, w2_ref[...], preferred_element_type=jnp.float32)

    @pl.when(j == pl.num_programs(1) - 1)
    def _finalize():
        y = acc_ref[...] + b2_ref[...]
        o_ref[...] = (x_ref[...].astype(jnp.float32) + y).astype(o_ref.dtype)


# ----------------------------------------------------------------------------- sizing
def _pick_tile_k4(hidden, hidden4, weight_budget_bytes, buf_factor):
    """Largest 4H slice (multiple of 128, or the full 4H) whose bf16 w1/w2 blocks fit
    the weight budget, accounting for the pipeline buffer count."""
    def wbytes(tk):
        return buf_factor * (hidden * tk + tk * hidden) * 2  # bf16 w1 + w2 blocks
    tk = hidden4
    while wbytes(tk) > weight_budget_bytes and tk % 2 == 0 and (tk // 2) % 128 == 0:
        tk //= 2
    return tk


def _pick_tile_b(batch, *, split_weights, min_parallel_tiles):
    """Batch tile: multiple of 16 (bf16 sublane packing), capped at 512 in the
    weight-split regime (amortizes per-tile weight re-streaming) / 256 otherwise; on
    v7x-like parts shrink so the 'parallel' axis exposes >= min_parallel_tiles tiles
    to the two TensorCores."""
    cap = 512 if split_weights else 256
    tb = min(cap, _round_up(batch, 16))
    if min_parallel_tiles > 1:
        per_core = _round_up(pl.cdiv(batch, min_parallel_tiles), 16)
        tb = min(tb, max(16, per_core))
    return max(16, _round_up(tb, 16))


# ----------------------------------------------------------------------------- wrapper
def residual_block(x, gamma, beta, w1, b1, w2, b2, *,
                   tile_b=None, tile_k4=None,
                   single_buffer_params=True, mish_dtype=None):
    """Eval-mode forward of ResidualBlock: x + Linear(Mish(Linear(LayerNorm(x)))).

    x:     (B, H)    gamma/beta: (1, H)  LayerNorm affine
    w1:    (H, 4H)   b1: (1, 4H)         (torch Linear weight stored as (in, out))
    w2:    (4H, H)   b2: (1, H)
    """
    B, H = x.shape
    H4 = w1.shape[1]

    vmem_cap, is_v7, has_bf16_vpu = _tpu_profile()
    if mish_dtype is None:
        mish_dtype = jnp.bfloat16 if has_bf16_vpu else jnp.float32

    single_buffer = bool(single_buffer_params) and hasattr(pl, "Buffered")
    buf_factor = 1 if single_buffer else 2
    # Weight-residency budget: generous on 128 MiB VMEM parts (v5e/v6e), tight on 64 MiB
    # parts (v7x); vmem_limit scaled from the queried capacity with headroom.
    weight_budget = 48 * 2**20 if vmem_cap >= 100 * 2**20 else 16 * 2**20
    vmem_limit = int(max(32 * 2**20, min(100 * 2**20, 0.85 * vmem_cap)))

    if tile_k4 is None:
        tile_k4 = _pick_tile_k4(H, H4, weight_budget, buf_factor)
    assert H4 % tile_k4 == 0 and (tile_k4 % 128 == 0 or tile_k4 == H4)
    split = tile_k4 != H4

    if tile_b is None:
        tile_b = _pick_tile_b(B, split_weights=split,
                              min_parallel_tiles=4 if is_v7 else 1)
    # Pad batch to a tile_b multiple (cdiv-style grid with a zero-padded tail) so odd
    # batch sizes never force tiny, MXU-underfilled tiles.
    Bp = _round_up(B, tile_b)
    assert Bp % tile_b == 0 and (tile_b % 8 == 0 or tile_b == Bp)
    x_in = x if Bp == B else jnp.pad(x, ((0, Bp - B), (0, 0)))

    # bf16 weights: native MXU operand width; halves weight VMEM footprint & HBM traffic.
    w1 = w1.astype(jnp.bfloat16)
    w2 = w2.astype(jnp.bfloat16)
    gamma = gamma.astype(jnp.float32)
    beta = beta.astype(jnp.float32)
    b1 = b1.astype(jnp.float32)
    b2 = b2.astype(jnp.float32)

    if not split:
        # Weight-resident path: 1-D grid over batch tiles.  No reduction axis, no f32
        # accumulator scratch, no init/finalize branches; grid-invariant params are
        # single-buffered.
        grid = (Bp // tile_b,)
        in_specs = [
            pl.BlockSpec((tile_b, H), lambda i: (i, 0)),                   # x
            _const_block_spec((1, H), lambda i: (0, 0), single_buffer),    # LN gamma
            _const_block_spec((1, H), lambda i: (0, 0), single_buffer),    # LN beta
            _const_block_spec((H, H4), lambda i: (0, 0), single_buffer),   # w1 (resident)
            _const_block_spec((1, H4), lambda i: (0, 0), single_buffer),   # b1
            _const_block_spec((H4, H), lambda i: (0, 0), single_buffer),   # w2 (resident)
            _const_block_spec((1, H), lambda i: (0, 0), single_buffer),    # b2
        ]
        out_specs = pl.BlockSpec((tile_b, H), lambda i: (i, 0))
        scratch_shapes = []
        kernel = functools.partial(_resident_kernel, mish_dtype=mish_dtype)
        dim_sem = ("parallel",)
    else:
        # Weight-split path: 2-D grid (batch tiles "parallel" x 4H slices "arbitrary");
        # the output tile is accumulated in an f32 VMEM scratch across the 4H axis.
        grid = (Bp // tile_b, H4 // tile_k4)
        in_specs = [
            pl.BlockSpec((tile_b, H), lambda i, j: (i, 0)),                   # x (resident over j)
            _const_block_spec((1, H), lambda i, j: (0, 0), single_buffer),    # LN gamma
            _const_block_spec((1, H), lambda i, j: (0, 0), single_buffer),    # LN beta
            pl.BlockSpec((H, tile_k4), lambda i, j: (0, j)),                  # w1 slice
            pl.BlockSpec((1, tile_k4), lambda i, j: (0, j)),                  # b1 slice
            pl.BlockSpec((tile_k4, H), lambda i, j: (j, 0)),                  # w2 slice
            _const_block_spec((1, H), lambda i, j: (0, 0), single_buffer),    # b2
        ]
        out_specs = pl.BlockSpec((tile_b, H), lambda i, j: (i, 0))            # accumulated over j
        scratch_shapes = [
            pltpu.VMEM((tile_b, H), jnp.bfloat16),   # cached LayerNorm output (MXU lhs)
            pltpu.VMEM((tile_b, H), jnp.float32),    # y accumulator
        ]
        kernel = functools.partial(_split_kernel, mish_dtype=mish_dtype)
        dim_sem = ("parallel", "arbitrary")

    out = pl.pallas_call(
        kernel,
        out_shape=jax.ShapeDtypeStruct((Bp, H), x.dtype),
        grid_spec=pltpu.PrefetchScalarGridSpec(
            num_scalar_prefetch=0,
            grid=grid,
            in_specs=in_specs,
            out_specs=out_specs,
            scratch_shapes=scratch_shapes,
        ),
        compiler_params=pltpu.CompilerParams(
            dimension_semantics=dim_sem,
            vmem_limit_bytes=vmem_limit,
        ),
    )(x_in, gamma, beta, w1, b1, w2, b2)

    return out if Bp == B else out[:B]


# ----------------------------------------------------------------------------- reference
def reference(x, gamma, beta, w1, b1, w2, b2, matmul_dtype=jnp.float32):
    """Pure-JAX reference of the eval-mode forward.

    matmul_dtype=bfloat16 emulates the kernel's mixed-precision matmuls (f32 accumulate).
    """
    c = lambda a: a.astype(matmul_dtype)
    xf = x.astype(jnp.float32)
    mean = jnp.mean(xf, axis=-1, keepdims=True)
    var = jnp.mean((xf - mean) ** 2, axis=-1, keepdims=True)
    xn = (xf - mean) * jax.lax.rsqrt(var + _LN_EPS) * gamma + beta
    h = jnp.dot(c(xn), c(w1), preferred_element_type=jnp.float32) + b1
    h = h * jnp.tanh(jax.nn.softplus(h))
    y = jnp.dot(c(h), c(w2), preferred_element_type=jnp.float32) + b2
    return x + y


if __name__ == "__main__":
    key = jax.random.PRNGKey(0)
    B, H = 64, 64
    H4 = 4 * H

    k = jax.random.split(key, 5)
    x = jax.random.normal(k[0], (B, H), dtype=jnp.float32)

    # Deterministic synthetic parameters (shapes follow nn.LayerNorm / nn.Linear;
    # Linear weights stored transposed as (in_dim, out_dim) for row-major matmul).
    gamma = jnp.ones((1, H), jnp.float32)
    beta = jnp.zeros((1, H), jnp.float32)
    w1 = jax.random.normal(k[1], (H, H4), jnp.float32) * (1.0 / jnp.sqrt(H))
    b1 = jax.random.normal(k[2], (1, H4), jnp.float32) * 0.01
    w2 = jax.random.normal(k[3], (H4, H), jnp.float32) * (1.0 / jnp.sqrt(H4))
    b2 = jax.random.normal(k[4], (1, H), jnp.float32) * 0.01

    def run(**kw):
        return jax.block_until_ready(residual_block(x, gamma, beta, w1, b1, w2, b2, **kw))

    # 1) Default config: weights resident -> 1-D grid, no accumulator, single-buffered
    #    params.  If this JAX build rejects pl.Buffered(1), fall back to double-buffering.
    try:
        out_resident = run()
        sb = True
    except Exception:
        out_resident = run(single_buffer_params=False)
        sb = False

    # 2) Forced weight-split config: exercises the 2-D grid / accumulate-over-4H path
    #    (f32 Mish chain so that code path compiles on any chip generation).
    out_split = run(tile_b=16, tile_k4=128, single_buffer_params=sb,
                    mish_dtype=jnp.float32)

    assert out_resident.shape == (B, H) and out_split.shape == (B, H)

    ref_bf16 = reference(x, gamma, beta, w1, b1, w2, b2, matmul_dtype=jnp.bfloat16)
    ref_f32 = reference(x, gamma, beta, w1, b1, w2, b2, matmul_dtype=jnp.float32)

    for out in (out_resident, out_split):
        # Tight check vs a reference emulating the kernel's bf16 MXU operands.
        assert jnp.allclose(out, ref_bf16, atol=5e-2, rtol=5e-2), "mismatch vs bf16 reference"
        # Loose sanity check vs pure-f32 math (bf16 operands => ~1e-2 rel deviation).
        assert jnp.allclose(out, ref_f32, atol=1.5e-1, rtol=1e-1), "mismatch vs f32 reference"
    # Both kernel paths should agree to bf16-rounding precision.
    assert jnp.allclose(out_resident, out_split, atol=5e-2, rtol=5e-2), "path mismatch"

    print("KERNEL_OK")
</pallas_src>

<mosaic_0001>
module attributes {stable_mosaic.version = 11 : i64} {
  func.func @_resident_kernel(%arg0: i32, %arg1: memref<64x64xf32, #tpu.memory_space<vmem>>, %arg2: memref<1x64xf32, #tpu.memory_space<vmem>>, %arg3: memref<1x64xf32, #tpu.memory_space<vmem>>, %arg4: memref<64x256xbf16, #tpu.memory_space<vmem>>, %arg5: memref<1x256xf32, #tpu.memory_space<vmem>>, %arg6: memref<256x64xbf16, #tpu.memory_space<vmem>>, %arg7: memref<1x64xf32, #tpu.memory_space<vmem>>, %arg8: memref<64x64xf32, #tpu.memory_space<vmem>>) attributes {dimension_semantics = [#tpu.dimension_semantics<parallel>], iteration_bounds = array<i64: 1>, scalar_prefetch = 0 : i64, scratch_operands = 0 : i64, tpu.core_type = #tpu.core_type<tc>, window_params = [{transform_indices = @transform_0, window_bounds = array<i64: 64, 64>}, {pipeline_mode = #tpu.pipeline_mode<synchronous>, transform_indices = @transform_1, window_bounds = array<i64: 1, 64>}, {pipeline_mode = #tpu.pipeline_mode<synchronous>, transform_indices = @transform_2, window_bounds = array<i64: 1, 64>}, {pipeline_mode = #tpu.pipeline_mode<synchronous>, transform_indices = @transform_3, window_bounds = array<i64: 64, 256>}, {pipeline_mode = #tpu.pipeline_mode<synchronous>, transform_indices = @transform_4, window_bounds = array<i64: 1, 256>}, {pipeline_mode = #tpu.pipeline_mode<synchronous>, transform_indices = @transform_5, window_bounds = array<i64: 256, 64>}, {pipeline_mode = #tpu.pipeline_mode<synchronous>, transform_indices = @transform_6, window_bounds = array<i64: 1, 64>}, {transform_indices = @transform_7, window_bounds = array<i64: 64, 64>}]} {
    %c0 = arith.constant 0 : index
    %c0_0 = arith.constant 0 : index
    %0 = vector.load %arg1[%c0, %c0_0] : memref<64x64xf32, #tpu.memory_space<vmem>>, vector<64x64xf32>
    %c0_1 = arith.constant 0 : index
    %c0_2 = arith.constant 0 : index
    %1 = vector.load %arg2[%c0_1, %c0_2] : memref<1x64xf32, #tpu.memory_space<vmem>>, vector<1x64xf32>
    %c0_3 = arith.constant 0 : index
    %c0_4 = arith.constant 0 : index
    %2 = vector.load %arg3[%c0_3, %c0_4] : memref<1x64xf32, #tpu.memory_space<vmem>>, vector<1x64xf32>
    %cst = arith.constant dense<0.000000e+00> : vector<64xf32>
    %3 = vector.multi_reduction <add>, %0, %cst [1] : vector<64x64xf32> to vector<64xf32>
    %4 = vector.shape_cast %3 : vector<64xf32> to vector<64x1xf32>
    %cst_5 = arith.constant 6.400000e+01 : f32
    %5 = vector.broadcast %cst_5 : f32 to vector<64x1xf32>
    %6 = arith.divf %4, %5 : vector<64x1xf32>
    %7 = vector.broadcast %6 : vector<64x1xf32> to vector<64x64xf32>
    %8 = arith.subf %0, %7 : vector<64x64xf32>
    %9 = arith.mulf %8, %8 : vector<64x64xf32>
    %cst_6 = arith.constant dense<0.000000e+00> : vector<64xf32>
    %10 = vector.multi_reduction <add>, %9, %cst_6 [1] : vector<64x64xf32> to vector<64xf32>
    %11 = vector.shape_cast %10 : vector<64xf32> to vector<64x1xf32>
    %cst_7 = arith.constant 6.400000e+01 : f32
    %12 = vector.broadcast %cst_7 : f32 to vector<64x1xf32>
    %13 = arith.divf %11, %12 : vector<64x1xf32>
    %cst_8 = arith.constant 9.99999974E-6 : f32
    %14 = vector.broadcast %cst_8 : f32 to vector<64x1xf32>
    %15 = arith.addf %13, %14 : vector<64x1xf32>
    %16 = math.rsqrt %15 : vector<64x1xf32>
    %17 = vector.broadcast %16 : vector<64x1xf32> to vector<64x64xf32>
    %18 = arith.mulf %8, %17 : vector<64x64xf32>
    %19 = vector.broadcast %1 : vector<1x64xf32> to vector<64x64xf32>
    %20 = arith.mulf %18, %19 : vector<64x64xf32>
    %21 = vector.broadcast %2 : vector<1x64xf32> to vector<64x64xf32>
    %22 = arith.addf %20, %21 : vector<64x64xf32>
    %23 = arith.truncf %22 : vector<64x64xf32> to vector<64x64xbf16>
    %c0_9 = arith.constant 0 : index
    %c0_10 = arith.constant 0 : index
    %24 = vector.load %arg4[%c0_9, %c0_10] : memref<64x256xbf16, #tpu.memory_space<vmem>>, vector<64x256xbf16>
    %cst_11 = arith.constant dense<0.000000e+00> : vector<64x256xf32>
    %25 = tpu.matmul %23, %24, %cst_11 {dimension_numbers = #tpu.dot_dimension_numbers<[1], [0], [0], [1], [0, 0, 1, 1], [], []>} : vector<64x64xbf16>, vector<64x256xbf16>, vector<64x256xf32> -> vector<64x256xf32>
    %c0_12 = arith.constant 0 : index
    %c0_13 = arith.constant 0 : index
    %26 = vector.load %arg5[%c0_12, %c0_13] : memref<1x256xf32, #tpu.memory_space<vmem>>, vector<1x256xf32>
    %27 = vector.broadcast %26 : vector<1x256xf32> to vector<64x256xf32>
    %28 = arith.addf %25, %27 : vector<64x256xf32>
    %cst_14 = arith.constant 2.000000e+01 : f32
    %29 = vector.broadcast %cst_14 : f32 to vector<64x256xf32>
    %30 = arith.minimumf %28, %29 : vector<64x256xf32>
    %31 = math.exp %30 : vector<64x256xf32>
    %cst_15 = arith.constant 1.000000e+00 : f32
    %32 = vector.broadcast %cst_15 : f32 to vector<64x256xf32>
    %33 = arith.addf %32, %31 : vector<64x256xf32>
    %34 = arith.mulf %33, %33 : vector<64x256xf32>
    %cst_16 = arith.constant 1.000000e+00 : f32
    %35 = vector.broadcast %cst_16 : f32 to vector<64x256xf32>
    %36 = arith.addf %34, %35 : vector<64x256xf32>
    %37 = tpu.reciprocal %36 {approx = true} : vector<64x256xf32> -> vector<64x256xf32>
    %cst_17 = arith.constant 2.000000e+00 : f32
    %38 = vector.broadcast %cst_17 : f32 to vector<64x256xf32>
    %39 = arith.mulf %38, %37 : vector<64x256xf32>
    %cst_18 = arith.constant 1.000000e+00 : f32
    %40 = vector.broadcast %cst_18 : f32 to vector<64x256xf32>
    %41 = arith.subf %40, %39 : vector<64x256xf32>
    %42 = arith.mulf %28, %41 : vector<64x256xf32>
    %43 = arith.truncf %42 : vector<64x256xf32> to vector<64x256xbf16>
    %c0_19 = arith.constant 0 : index
    %c0_20 = arith.constant 0 : index
    %44 = vector.load %arg6[%c0_19, %c0_20] : memref<256x64xbf16, #tpu.memory_space<vmem>>, vector<256x64xbf16>
    %cst_21 = arith.constant dense<0.000000e+00> : vector<64x64xf32>
    %45 = tpu.matmul %43, %44, %cst_21 {dimension_numbers = #tpu.dot_dimension_numbers<[1], [0], [0], [1], [0, 0, 1, 1], [], []>} : vector<64x256xbf16>, vector<256x64xbf16>, vector<64x64xf32> -> vector<64x64xf32>
    %46 = arith.addf %0, %45 : vector<64x64xf32>
    %c0_22 = arith.constant 0 : index
    %c0_23 = arith.constant 0 : index
    %47 = vector.load %arg7[%c0_22, %c0_23] : memref<1x64xf32, #tpu.memory_space<vmem>>, vector<1x64xf32>
    %48 = vector.broadcast %47 : vector<1x64xf32> to vector<64x64xf32>
    %49 = arith.addf %46, %48 : vector<64x64xf32>
    %c0_24 = arith.constant 0 : index
    %c0_25 = arith.constant 0 : index
    %50 = vector.load %arg8[%c0_24, %c0_25] : memref<64x64xf32, #tpu.memory_space<vmem>>, vector<64x64xf32>
    tpu.vector_store %arg8[%c0_24, %c0_25], %49 {strides = array<i32>} : memref<64x64xf32, #tpu.memory_space<vmem>>, vector<64x64xf32>,
    return
  }
  func.func @transform_0(%arg0: i32) -> (i32, i32) {
    %c0_i32 = arith.constant 0 : i32
    %c0_i32_0 = arith.constant 0 : i32
    return %arg0, %c0_i32 : i32, i32
  }
  func.func @transform_1(%arg0: i32) -> (i32, i32) {
    %c0_i32 = arith.constant 0 : i32
    %c0_i32_0 = arith.constant 0 : i32
    %c0_i32_1 = arith.constant 0 : i32
    return %c0_i32, %c0_i32_0 : i32, i32
  }
  func.func @transform_2(%arg0: i32) -> (i32, i32) {
    %c0_i32 = arith.constant 0 : i32
    %c0_i32_0 = arith.constant 0 : i32
    %c0_i32_1 = arith.constant 0 : i32
    return %c0_i32, %c0_i32_0 : i32, i32
  }
  func.func @transform_3(%arg0: i32) -> (i32, i32) {
    %c0_i32 = arith.constant 0 : i32
    %c0_i32_0 = arith.constant 0 : i32
    %c0_i32_1 = arith.constant 0 : i32
    return %c0_i32, %c0_i32_0 : i32, i32
  }
  func.func @transform_4(%arg0: i32) -> (i32, i32) {
    %c0_i32 = arith.constant 0 : i32
    %c0_i32_0 = arith.constant 0 : i32
    %c0_i32_1 = arith.constant 0 : i32
    return %c0_i32, %c0_i32_0 : i32, i32
  }
  func.func @transform_5(%arg0: i32) -> (i32, i32) {
    %c0_i32 = arith.constant 0 : i32
    %c0_i32_0 = arith.constant 0 : i32
    %c0_i32_1 = arith.constant 0 : i32
    return %c0_i32, %c0_i32_0 : i32, i32
  }
  func.func @transform_6(%arg0: i32) -> (i32, i32) {
    %c0_i32 = arith.constant 0 : i32
    %c0_i32_0 = arith.constant 0 : i32
    %c0_i32_1 = arith.constant 0 : i32
    return %c0_i32, %c0_i32_0 : i32, i32
  }
  func.func @transform_7(%arg0: i32) -> (i32, i32) {
    %c0_i32 = arith.constant 0 : i32
    %c0_i32_0 = arith.constant 0 : i32
    return %arg0, %c0_i32 : i32, i32
  }
}

module attributes {stable_mosaic.version = 11 : i64} {
  func.func @_resident_kernel(%arg0: i32, %arg1: memref<64x64xf32, #tpu.memory_space<vmem>>, %arg2: memref<1x64xf32, #tpu.memory_space<vmem>>, %arg3: memref<1x64xf32, #tpu.memory_space<vmem>>, %arg4: memref<64x256xbf16, #tpu.memory_space<vmem>>, %arg5: memref<1x256xf32, #tpu.memory_space<vmem>>, %arg6: memref<256x64xbf16, #tpu.memory_space<vmem>>, %arg7: memref<1x64xf32, #tpu.memory_space<vmem>>, %arg8: memref<64x64xf32, #tpu.memory_space<vmem>>) attributes {dimension_semantics = [#tpu.dimension_semantics<parallel>], iteration_bounds = array<i64: 1>, scalar_prefetch = 0 : i64, scratch_operands = 0 : i64, tpu.core_type = #tpu.core_type<tc>, window_params = [{transform_indices = @transform_0, window_bounds = array<i64: 64, 64>}, {pipeline_mode = #tpu.pipeline_mode<synchronous>, transform_indices = @transform_1, window_bounds = array<i64: 1, 64>}, {pipeline_mode = #tpu.pipeline_mode<synchronous>, transform_indices = @transform_2, window_bounds = array<i64: 1, 64>}, {pipeline_mode = #tpu.pipeline_mode<synchronous>, transform_indices = @transform_3, window_bounds = array<i64: 64, 256>}, {pipeline_mode = #tpu.pipeline_mode<synchronous>, transform_indices = @transform_4, window_bounds = array<i64: 1, 256>}, {pipeline_mode = #tpu.pipeline_mode<synchronous>, transform_indices = @transform_5, window_bounds = array<i64: 256, 64>}, {pipeline_mode = #tpu.pipeline_mode<synchronous>, transform_indices = @transform_6, window_bounds = array<i64: 1, 64>}, {transform_indices = @transform_7, window_bounds = array<i64: 64, 64>}]} {
    %c0 = arith.constant 0 : index
    %c0_0 = arith.constant 0 : index
    %0 = vector.load %arg1[%c0, %c0_0] : memref<64x64xf32, #tpu.memory_space<vmem>>, vector<64x64xf32>
    %c0_1 = arith.constant 0 : index
    %c0_2 = arith.constant 0 : index
    %1 = vector.load %arg2[%c0_1, %c0_2] : memref<1x64xf32, #tpu.memory_space<vmem>>, vector<1x64xf32>
    %c0_3 = arith.constant 0 : index
    %c0_4 = arith.constant 0 : index
    %2 = vector.load %arg3[%c0_3, %c0_4] : memref<1x64xf32, #tpu.memory_space<vmem>>, vector<1x64xf32>
    %cst = arith.constant dense<0.000000e+00> : vector<64xf32>
    %3 = vector.multi_reduction <add>, %0, %cst [1] : vector<64x64xf32> to vector<64xf32>
    %4 = vector.shape_cast %3 : vector<64xf32> to vector<64x1xf32>
    %cst_5 = arith.constant 6.400000e+01 : f32
    %5 = vector.broadcast %cst_5 : f32 to vector<64x1xf32>
    %6 = arith.divf %4, %5 : vector<64x1xf32>
    %7 = vector.broadcast %6 : vector<64x1xf32> to vector<64x64xf32>
    %8 = arith.subf %0, %7 : vector<64x64xf32>
    %9 = arith.mulf %8, %8 : vector<64x64xf32>
    %cst_6 = arith.constant dense<0.000000e+00> : vector<64xf32>
    %10 = vector.multi_reduction <add>, %9, %cst_6 [1] : vector<64x64xf32> to vector<64xf32>
    %11 = vector.shape_cast %10 : vector<64xf32> to vector<64x1xf32>
    %cst_7 = arith.constant 6.400000e+01 : f32
    %12 = vector.broadcast %cst_7 : f32 to vector<64x1xf32>
    %13 = arith.divf %11, %12 : vector<64x1xf32>
    %cst_8 = arith.constant 9.99999974E-6 : f32
    %14 = vector.broadcast %cst_8 : f32 to vector<64x1xf32>
    %15 = arith.addf %13, %14 : vector<64x1xf32>
    %16 = math.rsqrt %15 : vector<64x1xf32>
    %17 = vector.broadcast %16 : vector<64x1xf32> to vector<64x64xf32>
    %18 = arith.mulf %8, %17 : vector<64x64xf32>
    %19 = vector.broadcast %1 : vector<1x64xf32> to vector<64x64xf32>
    %20 = arith.mulf %18, %19 : vector<64x64xf32>
    %21 = vector.broadcast %2 : vector<1x64xf32> to vector<64x64xf32>
    %22 = arith.addf %20, %21 : vector<64x64xf32>
    %23 = arith.truncf %22 : vector<64x64xf32> to vector<64x64xbf16>
    %c0_9 = arith.constant 0 : index
    %c0_10 = arith.constant 0 : index
    %24 = vector.load %arg4[%c0_9, %c0_10] : memref<64x256xbf16, #tpu.memory_space<vmem>>, vector<64x256xbf16>
    %cst_11 = arith.constant dense<0.000000e+00> : vector<64x256xf32>
    %25 = tpu.matmul %23, %24, %cst_11 {dimension_numbers = #tpu.dot_dimension_numbers<[1], [0], [0], [1], [0, 0, 1, 1], [], []>} : vector<64x64xbf16>, vector<64x256xbf16>, vector<64x256xf32> -> vector<64x256xf32>
    %c0_12 = arith.constant 0 : index
    %c0_13 = arith.constant 0 : index
    %26 = vector.load %arg5[%c0_12, %c0_13] : memref<1x256xf32, #tpu.memory_space<vmem>>, vector<1x256xf32>
    %27 = vector.broadcast %26 : vector<1x256xf32> to vector<64x256xf32>
    %28 = arith.addf %25, %27 : vector<64x256xf32>
    %cst_14 = arith.constant 2.000000e+01 : f32
    %29 = vector.broadcast %cst_14 : f32 to vector<64x256xf32>
    %30 = arith.minimumf %28, %29 : vector<64x256xf32>
    %31 = math.exp %30 : vector<64x256xf32>
    %cst_15 = arith.constant 1.000000e+00 : f32
    %32 = vector.broadcast %cst_15 : f32 to vector<64x256xf32>
    %33 = arith.addf %32, %31 : vector<64x256xf32>
    %34 = arith.mulf %33, %33 : vector<64x256xf32>
    %cst_16 = arith.constant 1.000000e+00 : f32
    %35 = vector.broadcast %cst_16 : f32 to vector<64x256xf32>
    %36 = arith.addf %34, %35 : vector<64x256xf32>
    %37 = tpu.reciprocal %36 {approx = true} : vector<64x256xf32> -> vector<64x256xf32>
    %cst_17 = arith.constant 2.000000e+00 : f32
    %38 = vector.broadcast %cst_17 : f32 to vector<64x256xf32>
    %39 = arith.mulf %38, %37 : vector<64x256xf32>
    %cst_18 = arith.constant 1.000000e+00 : f32
    %40 = vector.broadcast %cst_18 : f32 to vector<64x256xf32>
    %41 = arith.subf %40, %39 : vector<64x256xf32>
    %42 = arith.mulf %28, %41 : vector<64x256xf32>
    %43 = arith.truncf %42 : vector<64x256xf32> to vector<64x256xbf16>
    %c0_19 = arith.constant 0 : index
    %c0_20 = arith.constant 0 : index
    %44 = vector.load %arg6[%c0_19, %c0_20] : memref<256x64xbf16, #tpu.memory_space<vmem>>, vector<256x64xbf16>
    %cst_21 = arith.constant dense<0.000000e+00> : vector<64x64xf32>
    %45 = tpu.matmul %43, %44, %cst_21 {dimension_numbers = #tpu.dot_dimension_numbers<[1], [0], [0], [1], [0, 0, 1, 1], [], []>} : vector<64x256xbf16>, vector<256x64xbf16>, vector<64x64xf32> -> vector<64x64xf32>
    %46 = arith.addf %0, %45 : vector<64x64xf32>
    %c0_22 = arith.constant 0 : index
    %c0_23 = arith.constant 0 : index
    %47 = vector.load %arg7[%c0_22, %c0_23] : memref<1x64xf32, #tpu.memory_space<vmem>>, vector<1x64xf32>
    %48 = vector.broadcast %47 : vector<1x64xf32> to vector<64x64xf32>
    %49 = arith.addf %46, %48 : vector<64x64xf32>
    %c0_24 = arith.constant 0 : index
    %c0_25 = arith.constant 0 : index
    %50 = vector.load %arg8[%c0_24, %c0_25] : memref<64x64xf32, #tpu.memory_space<vmem>>, vector<64x64xf32>
    tpu.vector_store %arg8[%c0_24, %c0_25], %49 {strides = array<i32>} : memref<64x64xf32, #tpu.memory_space<vmem>>, vector<64x64xf32>,
    return
  }
  func.func @transform_0(%arg0: i32) -> (i32, i32) {
    %c0_i32 = arith.constant 0 : i32
    %c0_i32_0 = arith.constant 0 : i32
    return %arg0, %c0_i32 : i32, i32
  }
  func.func @transform_1(%arg0: i32) -> (i32, i32) {
    %c0_i32 = arith.constant 0 : i32
    %c0_i32_0 = arith.constant 0 : i32
    %c0_i32_1 = arith.constant 0 : i32
    return %c0_i32, %c0_i32_0 : i32, i32
  }
  func.func @transform_2(%arg0: i32) -> (i32, i32) {
    %c0_i32 = arith.constant 0 : i32
    %c0_i32_0 = arith.constant 0 : i32
    %c0_i32_1 = arith.constant 0 : i32
    return %c0_i32, %c0_i32_0 : i32, i32
  }
  func.func @transform_3(%arg0: i32) -> (i32, i32) {
    %c0_i32 = arith.constant 0 : i32
    %c0_i32_0 = arith.constant 0 : i32
    %c0_i32_1 = arith.constant 0 : i32
    return %c0_i32, %c0_i32_0 : i32, i32
  }
  func.func @transform_4(%arg0: i32) -> (i32, i32) {
    %c0_i32 = arith.constant 0 : i32
    %c0_i32_0 = arith.constant 0 : i32
    %c0_i32_1 = arith.constant 0 : i32
    return %c0_i32, %c0_i32_0 : i32, i32
  }
  func.func @transform_5(%arg0: i32) -> (i32, i32) {
    %c0_i32 = arith.constant 0 : i32
    %c0_i32_0 = arith.constant 0 : i32
    %c0_i32_1 = arith.constant 0 : i32
    return %c0_i32, %c0_i32_0 : i32, i32
  }
  func.func @transform_6(%arg0: i32) -> (i32, i32) {
    %c0_i32 = arith.constant 0 : i32
    %c0_i32_0 = arith.constant 0 : i32
    %c0_i32_1 = arith.constant 0 : i32
    return %c0_i32, %c0_i32_0 : i32, i32
  }
  func.func @transform_7(%arg0: i32) -> (i32, i32) {
    %c0_i32 = arith.constant 0 : i32
    %c0_i32_0 = arith.constant 0 : i32
    return %arg0, %c0_i32 : i32, i32
  }
}

</mosaic_0001>

<llo_original>
// kernel: tpu_custom_call.1
$region0: #{tpu_custom_call.1}
  #allocation0 [shape = 'u32[]', space=smem, size = 0x4, offset = 0x4, fixed_abs, tag = 'smem constant byte address 0x4 - core index']
  #allocation1 [shape = 'u32[72,128]{1,0:T(1,128)}', space=vmem, size = 0x9000, scoped, tag = 'internal scratch']
  %s0 = inlined_call_operand.vmem [shape: f32[64,64], index: 0, kind: input, shape index: {}]
  %s1 = inlined_call_operand.vmem [shape: f32[1,64], index: 1, kind: input, shape index: {}]
  %s2 = inlined_call_operand.vmem [shape: f32[1,64], index: 2, kind: input, shape index: {}]
  %s3 = inlined_call_operand.vmem [shape: bf16[64,256], index: 3, kind: input, shape index: {}]
  %s4 = inlined_call_operand.vmem [shape: f32[1,256], index: 4, kind: input, shape index: {}]
  %s5 = inlined_call_operand.vmem [shape: bf16[256,64], index: 5, kind: input, shape index: {}]
  %s6 = inlined_call_operand.vmem [shape: f32[1,64], index: 6, kind: input, shape index: {}]
  %s7 = inlined_call_operand.hbm [shape: f32[64,64], index: 7, kind: output, shape index: {}]
  %s8 = sld [smem:[#allocation0]]
  $region38: #{tpu_custom_call.1} parent=0
    _
  %s10 = ssub.s32 1, %s8
  %s11 = scalar_select 0, %s10, %s8
  $region1: #{tpu_custom_call.1} parent=0
    #allocation2 [shape = 'u8[32768]{0}', space=vmem, size = 0x8000, scoped, tag = 'output window, operand 0, single buffered']
    #allocation3 [shape = 's32[1]{0}', space=sflag, size = 0x4, scoped, tag = 'scoped memory for tpu_custom_call.1']
    %12 = vsyncpa [#allocation3], 0
    // Predicated region
    $region2: #{tpu_custom_call.1} parent=1 // pred_check
      _
    $region3: #{tpu_custom_call.1} parent=1 // pred_check_branch
      %14 = sbr.rel (0) target = $region5
    $region4: #{tpu_custom_call.1} parent=1 // pred_region
      _
    $region5: #{tpu_custom_call.1} parent=1 // pred_fallthru
      _
    // Predicated region
    $region6: #{tpu_custom_call.1} parent=1 // pred_check
      _
    $region7: #{tpu_custom_call.1} parent=1 // pred_check_branch
      %16 = sbr.rel (0) target = $region9
    $region8: #{tpu_custom_call.1} parent=1 // pred_region
      _
    $region9: #{tpu_custom_call.1} parent=1 // pred_fallthru
      _
    // Predicated region
    $region10: #{tpu_custom_call.1} parent=1 // pred_check
      _
    $region11: #{tpu_custom_call.1} parent=1 // pred_check_branch
      %18 = sbr.rel (0) target = $region13
    $region12: #{tpu_custom_call.1} parent=1 // pred_region
      _
    $region13: #{tpu_custom_call.1} parent=1 // pred_fallthru
      _
    // Predicated region
    $region14: #{tpu_custom_call.1} parent=1 // pred_check
      _
    $region15: #{tpu_custom_call.1} parent=1 // pred_check_branch
      %20 = sbr.rel (0) target = $region17
    $region16: #{tpu_custom_call.1} parent=1 // pred_region
      _
    $region17: #{tpu_custom_call.1} parent=1 // pred_fallthru
      _
    // Predicated region
    $region18: #{tpu_custom_call.1} parent=1 // pred_check
      _
    $region19: #{tpu_custom_call.1} parent=1 // pred_check_branch
      %22 = sbr.rel (0) target = $region21
    $region20: #{tpu_custom_call.1} parent=1 // pred_region
      _
    $region21: #{tpu_custom_call.1} parent=1 // pred_fallthru
      _
    // Predicated region
    $region22: #{tpu_custom_call.1} parent=1 // pred_check
      _
    $region23: #{tpu_custom_call.1} parent=1 // pred_check_branch
      %24 = sbr.rel (0) target = $region25
    $region24: #{tpu_custom_call.1} parent=1 // pred_region
      _
    $region25: #{tpu_custom_call.1} parent=1 // pred_fallthru
      _
    // Predicated region
    $region26: #{tpu_custom_call.1} parent=1 // pred_check
      _
    $region27: #{tpu_custom_call.1} parent=1 // pred_check_branch
      %26 = sbr.rel (0) target = $region29
    $region28: #{tpu_custom_call.1} parent=1 // pred_region
      _
    $region29: #{tpu_custom_call.1} parent=1 // pred_fallthru
      _
    %v28 = vld [vmem:[%s0] sm:$0xff]
    %v29 = vld [vmem:[%s0 + $0x8] sm:$0xff]
    %v30 = vld [vmem:[%s0 + $0x10] sm:$0xff]
    %v31 = vld [vmem:[%s0 + $0x18] sm:$0xff]
    %v32 = vld [vmem:[%s0 + $0x20] sm:$0xff]
    %v33 = vld [vmem:[%s0 + $0x28] sm:$0xff]
    %v34 = vld [vmem:[%s0 + $0x30] sm:$0xff]
    %v35 = vld [vmem:[%s0 + $0x38] sm:$0xff]
    %v36 = vld [vmem:[%s1] sm:$0x1]
    %v37 = vld [vmem:[%s2] sm:$0x1]
    %vm38 = vcmask 523264
    %v39 = vsel %vm38, %v28, 0.0
    %40 = vadd.xlane.f32.xlu0 %v39
    %v41 = vpop.xlane.xlu0 %40
    %v42 = vsel %vm38, %v29, 0.0
    %43 = vadd.xlane.f32.xlu0 %v42
    %v44 = vpop.xlane.xlu0 %43
    %v45 = vsel %vm38, %v30, 0.0
    %46 = vadd.xlane.f32.xlu0 %v45
    %v47 = vpop.xlane.xlu0 %46
    %v48 = vsel %vm38, %v31, 0.0
    %49 = vadd.xlane.f32.xlu0 %v48
    %v50 = vpop.xlane.xlu0 %49
    %v51 = vsel %vm38, %v32, 0.0
    %52 = vadd.xlane.f32.xlu0 %v51
    %v53 = vpop.xlane.xlu0 %52
    %v54 = vsel %vm38, %v33, 0.0
    %55 = vadd.xlane.f32.xlu0 %v54
    %v56 = vpop.xlane.xlu0 %55
    %v57 = vsel %vm38, %v34, 0.0
    %58 = vadd.xlane.f32.xlu0 %v57
    %v59 = vpop.xlane.xlu0 %58
    %v60 = vsel %vm38, %v35, 0.0
    %61 = vadd.xlane.f32.xlu0 %v60
    %v62 = vpop.xlane.xlu0 %61
    %v63 = vrcp.pop 64.0
    %v64 = vmul.f32 64.0, %v63
    %v65 = vsub.f32 1.0, %v64
    %v66 = vmul.f32 %v63, %v65
    %v67 = vadd.f32 %v63, %v66
    %vm68 = vweird.f32 %v63
    %v69 = vsel %vm68, %v63, %v67
    %v70 = vmul.f32 %v41, %v69
    %v71 = vmul.f32 %v44, %v69
    %v72 = vmul.f32 %v47, %v69
    %v73 = vmul.f32 %v50, %v69
    %v74 = vmul.f32 %v53, %v69
    %v75 = vmul.f32 %v56, %v69
    %v76 = vmul.f32 %v59, %v69
    %v77 = vmul.f32 %v62, %v69
    %v78 = vsub.f32 %v28, %v70
    %v79 = vsub.f32 %v29, %v71
    %v80 = vsub.f32 %v30, %v72
    %v81 = vsub.f32 %v31, %v73
    %v82 = vsub.f32 %v32, %v74
    %v83 = vsub.f32 %v33, %v75
    %v84 = vsub.f32 %v34, %v76
    %v85 = vsub.f32 %v35, %v77
    %v86 = vmul.f32 %v78, %v78
    %v87 = vmul.f32 %v79, %v79
    %v88 = vmul.f32 %v80, %v80
    %v89 = vmul.f32 %v81, %v81
    %v90 = vmul.f32 %v82, %v82
    %v91 = vmul.f32 %v83, %v83
    %v92 = vmul.f32 %v84, %v84
    %v93 = vmul.f32 %v85, %v85
    %v94 = vsel %vm38, %v86, 0.0
    %95 = vadd.xlane.f32.xlu0 %v94
    %v96 = vpop.xlane.xlu0 %95
    %v97 = vsel %vm38, %v87, 0.0
    %98 = vadd.xlane.f32.xlu0 %v97
    %v99 = vpop.xlane.xlu0 %98
    %v100 = vsel %vm38, %v88, 0.0
    %101 = vadd.xlane.f32.xlu0 %v100
    %v102 = vpop.xlane.xlu0 %101
    %v103 = vsel %vm38, %v89, 0.0
    %104 = vadd.xlane.f32.xlu0 %v103
    %v105 = vpop.xlane.xlu0 %104
    %v106 = vsel %vm38, %v90, 0.0
    %107 = vadd.xlane.f32.xlu0 %v106
    %v108 = vpop.xlane.xlu0 %107
    %v109 = vsel %vm38, %v91, 0.0
    %110 = vadd.xlane.f32.xlu0 %v109
    %v111 = vpop.xlane.xlu0 %110
    %v112 = vsel %vm38, %v92, 0.0
    %113 = vadd.xlane.f32.xlu0 %v112
    %v114 = vpop.xlane.xlu0 %113
    %v115 = vsel %vm38, %v93, 0.0
    %116 = vadd.xlane.f32.xlu0 %v115
    %v117 = vpop.xlane.xlu0 %116
    %v118 = vmul.f32 %v96, %v69
    %v119 = vmul.f32 %v99, %v69
    %v120 = vmul.f32 %v102, %v69
    %v121 = vmul.f32 %v105, %v69
    %v122 = vmul.f32 %v108, %v69
    %v123 = vmul.f32 %v111, %v69
    %v124 = vmul.f32 %v114, %v69
    %v125 = vmul.f32 %v117, %v69
    %v126 = vadd.f32 %v118, 1e-05
    %v127 = vadd.f32 %v119, 1e-05
    %v128 = vadd.f32 %v120, 1e-05
    %v129 = vadd.f32 %v121, 1e-05
    %v130 = vadd.f32 %v122, 1e-05
    %v131 = vadd.f32 %v123, 1e-05
    %v132 = vadd.f32 %v124, 1e-05
    %v133 = vadd.f32 %v125, 1e-05
    %v134 = vrsqrt.pop %v126
    %v135 = vmul.f32 %v134, %v126
    %v136 = vmul.f32 %v135, %v134
    %v137 = vmul.f32 0.5, %v136
    %v138 = vsub.f32 1.5, %v137
    %v139 = vmul.f32 %v134, %v138
    %vm140 = vweird.f32 %v126
    %vm141 = vweird.f32 %v134
    %vm142 = vmor %vm140, %vm141
    %v143 = vsel %vm142, %v134, %v139
    %v144 = vrsqrt.pop %v127
    %v145 = vmul.f32 %v144, %v127
    %v146 = vmul.f32 %v145, %v144
    %v147 = vmul.f32 0.5, %v146
    %v148 = vsub.f32 1.5, %v147
    %v149 = vmul.f32 %v144, %v148
    %vm150 = vweird.f32 %v127
    %vm151 = vweird.f32 %v144
    %vm152 = vmor %vm150, %vm151
    %v153 = vsel %vm152, %v144, %v149
    %v154 = vrsqrt.pop %v128
    %v155 = vmul.f32 %v154, %v128
    %v156 = vmul.f32 %v155, %v154
    %v157 = vmul.f32 0.5, %v156
    %v158 = vsub.f32 1.5, %v157
    %v159 = vmul.f32 %v154, %v158
    %vm160 = vweird.f32 %v128
    %vm161 = vweird.f32 %v154
    %vm162 = vmor %vm160, %vm161
    %v163 = vsel %vm162, %v154, %v159
    %v164 = vrsqrt.pop %v129
    %v165 = vmul.f32 %v164, %v129
    %v166 = vmul.f32 %v165, %v164
    %v167 = vmul.f32 0.5, %v166
    %v168 = vsub.f32 1.5, %v167
    %v169 = vmul.f32 %v164, %v168
    %vm170 = vweird.f32 %v129
    %vm171 = vweird.f32 %v164
    %vm172 = vmor %vm170, %vm171
    %v173 = vsel %vm172, %v164, %v169
    %v174 = vrsqrt.pop %v130
    %v175 = vmul.f32 %v174, %v130
    %v176 = vmul.f32 %v175, %v174
    %v177 = vmul.f32 0.5, %v176
    %v178 = vsub.f32 1.5, %v177
    %v179 = vmul.f32 %v174, %v178
    %vm180 = vweird.f32 %v130
    %vm181 = vweird.f32 %v174
    %vm182 = vmor %vm180, %vm181
    %v183 = vsel %vm182, %v174, %v179
    %v184 = vrsqrt.pop %v131
    %v185 = vmul.f32 %v184, %v131
    %v186 = vmul.f32 %v185, %v184
    %v187 = vmul.f32 0.5, %v186
    %v188 = vsub.f32 1.5, %v187
    %v189 = vmul.f32 %v184, %v188
    %vm190 = vweird.f32 %v131
    %vm191 = vweird.f32 %v184
    %vm192 = vmor %vm190, %vm191
    %v193 = vsel %vm192, %v184, %v189
    %v194 = vrsqrt.pop %v132
    %v195 = vmul.f32 %v194, %v132
    %v196 = vmul.f32 %v195, %v194
    %v197 = vmul.f32 0.5, %v196
    %v198 = vsub.f32 1.5, %v197
    %v199 = vmul.f32 %v194, %v198
    %vm200 = vweird.f32 %v132
    %vm201 = vweird.f32 %v194
    %vm202 = vmor %vm200, %vm201
    %v203 = vsel %vm202, %v194, %v199
    %v204 = vrsqrt.pop %v133
    %v205 = vmul.f32 %v204, %v133
    %v206 = vmul.f32 %v205, %v204
    %v207 = vmul.f32 0.5, %v206
    %v208 = vsub.f32 1.5, %v207
    %v209 = vmul.f32 %v204, %v208
    %vm210 = vweird.f32 %v133
    %vm211 = vweird.f32 %v204
    %vm212 = vmor %vm210, %vm211
    %v213 = vsel %vm212, %v204, %v209
    %v214 = vmul.f32 %v78, %v143
    %v215 = vmul.f32 %v79, %v153
    %v216 = vmul.f32 %v80, %v163
    %v217 = vmul.f32 %v81, %v173
    %v218 = vmul.f32 %v82, %v183
    %v219 = vmul.f32 %v83, %v193
    %v220 = vmul.f32 %v84, %v203
    %v221 = vmul.f32 %v85, %v213
    %v223 = vperm.slane %v36, 0
    %v225 = vmul.f32 %v214, %v223
    %v226 = vmul.f32 %v215, %v223
    %v227 = vmul.f32 %v216, %v223
    %v228 = vmul.f32 %v217, %v223
    %v229 = vmul.f32 %v218, %v223
    %v230 = vmul.f32 %v219, %v223
    %v231 = vmul.f32 %v220, %v223
    %v232 = vmul.f32 %v221, %v223
    %v234 = vperm.slane %v37, 0
    %v236 = vadd.f32 %v225, %v234
    %v237 = vadd.f32 %v226, %v234
    %v238 = vadd.f32 %v227, %v234
    %v239 = vadd.f32 %v228, %v234
    %v240 = vadd.f32 %v229, %v234
    %v241 = vadd.f32 %v230, %v234
    %v242 = vadd.f32 %v231, %v234
    %v243 = vadd.f32 %v232, %v234
    %v244 = vpack.c.bf16 %v237, %v236
    %v245 = vpack.c.bf16 %v239, %v238
    %v246 = vpack.c.bf16 %v241, %v240
    %v247 = vpack.c.bf16 %v243, %v242
    %v248 = vld [vmem:[%s3] sm:$0xff]
    %v249 = vld [vmem:[%s3 + $0x8] sm:$0xff]
    %v250 = vld [vmem:[%s3 + $0x10] sm:$0xff]
    %v251 = vld [vmem:[%s3 + $0x18] sm:$0xff]
    %v252 = vld [vmem:[%s3 + $0x20] sm:$0xff]
    %v253 = vld [vmem:[%s3 + $0x28] sm:$0xff]
    %v254 = vld [vmem:[%s3 + $0x30] sm:$0xff]
    %v255 = vld [vmem:[%s3 + $0x38] sm:$0xff]
    %v256 = vld [vmem:[%s4] sm:$0x3]
    %v258 = vperm.slane %v256, 0
    %v259 = vperm.slane %v256, 1
    %v270 = vunpack.c.l.b16 %v248
    %v271 = vunpack.c.h.b16 %v248
    %v272 = vunpack.c.l.b16 %v249
    %v273 = vunpack.c.h.b16 %v249
    %v274 = vunpack.c.l.b16 %v250
    %v275 = vunpack.c.h.b16 %v250
    %v276 = vunpack.c.l.b16 %v251
    %v277 = vunpack.c.h.b16 %v251
    %v278 = vunpack.c.l.b16 %v252
    %v279 = vunpack.c.h.b16 %v252
    %v280 = vunpack.c.l.b16 %v253
    %v281 = vunpack.c.h.b16 %v253
    %v282 = vunpack.c.l.b16 %v254
    %v283 = vunpack.c.h.b16 %v254
    %v284 = vunpack.c.l.b16 %v255
    %v285 = vunpack.c.h.b16 %v255
    %v286 = vpack.c.b16 %v272, %v270
    %v287 = vpack.c.b16 %v273, %v271
    %v288 = vpack.c.b16 %v276, %v274
    %v289 = vpack.c.b16 %v277, %v275
    %v290 = vpack.c.b16 %v280, %v278
    %v291 = vpack.c.b16 %v281, %v279
    %v292 = vpack.c.b16 %v284, %v282
    %v293 = vpack.c.b16 %v285, %v283
    %v303 = vsel %vm38, %v244, 0
    %v306 = vsel %vm38, %v245, 0
    %v309 = vsel %vm38, %v246, 0
    %v312 = vsel %vm38, %v247, 0
    %314 = vmatpush.bf16.msra.mxu0 0
    %315 = vmatpush.bf16.msra.mxu0 0
    %316 = vmatpush.bf16.msra.mxu0 0
    %317 = vmatpush.bf16.msra.mxu0 0
    %318 = vmatpush.bf16.msra.mxu0 %v292
    %319 = vmatpush.bf16.msra.mxu0 %v290
    %320 = vmatpush.bf16.msra.mxu0 %v288
    %321 = vmatpush.bf16.msra.mxu0 %v286
    %322 = vmatmul.bf16.gmra.mxu0 %v303
    %v323 = vpop.f32.mrf.mxu0
    %v324 = vadd.f32 %v258, %v323
    %v325 = vpop.f32.mrf.mxu0
    %v326 = vadd.f32 %v258, %v325
    %327 = vmatmul.bf16.gmra.mxu0 %v306
    %v328 = vpop.f32.mrf.mxu0
    %v329 = vadd.f32 %v258, %v328
    %v330 = vpop.f32.mrf.mxu0
    %v331 = vadd.f32 %v258, %v330
    %332 = vmatmul.bf16.gmra.mxu0 %v309
    %v333 = vpop.f32.mrf.mxu0
    %v334 = vadd.f32 %v258, %v333
    %v335 = vpop.f32.mrf.mxu0
    %v336 = vadd.f32 %v258, %v335
    %337 = vmatmul.bf16.gmra.mxu0 %v312
    %v338 = vpop.f32.mrf.mxu0
    %v339 = vadd.f32 %v258, %v338
    %v340 = vpop.f32.mrf.mxu0
    %v341 = vadd.f32 %v258, %v340
    %342 = vdwg.mxu0
    %343 = vmatpush.bf16.msra.mxu0 0
    %344 = vmatpush.bf16.msra.mxu0 0
    %345 = vmatpush.bf16.msra.mxu0 0
    %346 = vmatpush.bf16.msra.mxu0 0
    %347 = vmatpush.bf16.msra.mxu0 %v293
    %348 = vmatpush.bf16.msra.mxu0 %v291
    %349 = vmatpush.bf16.msra.mxu0 %v289
    %350 = vmatpush.bf16.msra.mxu0 %v287
    %351 = vmatmul.bf16.gmra.mxu0 %v303
    %v352 = vpop.f32.mrf.mxu0
    %v353 = vadd.f32 %v259, %v352
    %v354 = vpop.f32.mrf.mxu0
    %v355 = vadd.f32 %v259, %v354
    %356 = vmatmul.bf16.gmra.mxu0 %v306
    %v357 = vpop.f32.mrf.mxu0
    %v358 = vadd.f32 %v259, %v357
    %v359 = vpop.f32.mrf.mxu0
    %v360 = vadd.f32 %v259, %v359
    %361 = vmatmul.bf16.gmra.mxu0 %v309
    %v362 = vpop.f32.mrf.mxu0
    %v363 = vadd.f32 %v259, %v362
    %v364 = vpop.f32.mrf.mxu0
    %v365 = vadd.f32 %v259, %v364
    %366 = vmatmul.bf16.gmra.mxu0 %v312
    %v367 = vpop.f32.mrf.mxu0
    %v368 = vadd.f32 %v259, %v367
    %v369 = vpop.f32.mrf.mxu0
    %v370 = vadd.f32 %v259, %v369
    %371 = vdwg.mxu0
    %v372 = vmin.f32 %v324, 20.0
    %v373 = vmin.f32 %v353, 20.0
    %v374 = vmin.f32 %v326, 20.0
    %v375 = vmin.f32 %v355, 20.0
    %v376 = vmin.f32 %v329, 20.0
    %v377 = vmin.f32 %v358, 20.0
    %v378 = vmin.f32 %v331, 20.0
    %v379 = vmin.f32 %v360, 20.0
    %v380 = vmin.f32 %v334, 20.0
    %v381 = vmin.f32 %v363, 20.0
    %v382 = vmin.f32 %v336, 20.0
    %v383 = vmin.f32 %v365, 20.0
    %v384 = vmin.f32 %v339, 20.0
    %v385 = vmin.f32 %v368, 20.0
    %v386 = vmin.f32 %v341, 20.0
    %v387 = vmin.f32 %v370, 20.0
    %v388 = vmul.f32 %v372, 1.442695
    %v389 = vpow.pop %v388
    %v390 = vmul.f32 %v373, 1.442695
    %v391 = vpow.pop %v390
    %v392 = vmul.f32 %v374, 1.442695
    %v393 = vpow.pop %v392
    %v394 = vmul.f32 %v375, 1.442695
    %v395 = vpow.pop %v394
    %v396 = vmul.f32 %v376, 1.442695
    %v397 = vpow.pop %v396
    %v398 = vmul.f32 %v377, 1.442695
    %v399 = vpow.pop %v398
    %v400 = vmul.f32 %v378, 1.442695
    %v401 = vpow.pop %v400
    %v402 = vmul.f32 %v379, 1.442695
    %v403 = vpow.pop %v402
    %v404 = vmul.f32 %v380, 1.442695
    %v405 = vpow.pop %v404
    %v406 = vmul.f32 %v381, 1.442695
    %v407 = vpow.pop %v406
    %v408 = vmul.f32 %v382, 1.442695
    %v409 = vpow.pop %v408
    %v410 = vmul.f32 %v383, 1.442695
    %v411 = vpow.pop %v410
    %v412 = vmul.f32 %v384, 1.442695
    %v413 = vpow.pop %v412
    %v414 = vmul.f32 %v385, 1.442695
    %v415 = vpow.pop %v414
    %v416 = vmul.f32 %v386, 1.442695
    %v417 = vpow.pop %v416
    %v418 = vmul.f32 %v387, 1.442695
    %v419 = vpow.pop %v418
    %v420 = vadd.f32 %v389, 1.0
    %v421 = vadd.f32 %v391, 1.0
    %v422 = vadd.f32 %v393, 1.0
    %v423 = vadd.f32 %v395, 1.0
    %v424 = vadd.f32 %v397, 1.0
    %v425 = vadd.f32 %v399, 1.0
    %v426 = vadd.f32 %v401, 1.0
    %v427 = vadd.f32 %v403, 1.0
    %v428 = vadd.f32 %v405, 1.0
    %v429 = vadd.f32 %v407, 1.0
    %v430 = vadd.f32 %v409, 1.0
    %v431 = vadd.f32 %v411, 1.0
    %v432 = vadd.f32 %v413, 1.0
    %v433 = vadd.f32 %v415, 1.0
    %v434 = vadd.f32 %v417, 1.0
    %v435 = vadd.f32 %v419, 1.0
    %v436 = vmul.f32 %v420, %v420
    %v437 = vmul.f32 %v421, %v421
    %v438 = vmul.f32 %v422, %v422
    %v439 = vmul.f32 %v423, %v423
    %v440 = vmul.f32 %v424, %v424
    %v441 = vmul.f32 %v425, %v425
    %v442 = vmul.f32 %v426, %v426
    %v443 = vmul.f32 %v427, %v427
    %v444 = vmul.f32 %v428, %v428
    %v445 = vmul.f32 %v429, %v429
    %v446 = vmul.f32 %v430, %v430
    %v447 = vmul.f32 %v431, %v431
    %v448 = vmul.f32 %v432, %v432
    %v449 = vmul.f32 %v433, %v433
    %v450 = vmul.f32 %v434, %v434
    %v451 = vmul.f32 %v435, %v435
    %v452 = vadd.f32 %v436, 1.0
    %v453 = vadd.f32 %v437, 1.0
    %v454 = vadd.f32 %v438, 1.0
    %v455 = vadd.f32 %v439, 1.0
    %v456 = vadd.f32 %v440, 1.0
    %v457 = vadd.f32 %v441, 1.0
    %v458 = vadd.f32 %v442, 1.0
    %v459 = vadd.f32 %v443, 1.0
    %v460 = vadd.f32 %v444, 1.0
    %v461 = vadd.f32 %v445, 1.0
    %v462 = vadd.f32 %v446, 1.0
    %v463 = vadd.f32 %v447, 1.0
    %v464 = vadd.f32 %v448, 1.0
    %v465 = vadd.f32 %v449, 1.0
    %v466 = vadd.f32 %v450, 1.0
    %v467 = vadd.f32 %v451, 1.0
    %v468 = vrcp.pop %v452
    %v469 = vrcp.pop %v453
    %v470 = vrcp.pop %v454
    %v471 = vrcp.pop %v455
    %v472 = vrcp.pop %v456
    %v473 = vrcp.pop %v457
    %v474 = vrcp.pop %v458
    %v475 = vrcp.pop %v459
    %v476 = vrcp.pop %v460
    %v477 = vrcp.pop %v461
    %v478 = vrcp.pop %v462
    %v479 = vrcp.pop %v463
    %v480 = vrcp.pop %v464
    %v481 = vrcp.pop %v465
    %v482 = vrcp.pop %v466
    %v483 = vrcp.pop %v467
    %v484 = vmul.f32 %v468, 2.0
    %v485 = vmul.f32 %v469, 2.0
    %v486 = vmul.f32 %v470, 2.0
    %v487 = vmul.f32 %v471, 2.0
    %v488 = vmul.f32 %v472, 2.0
    %v489 = vmul.f32 %v473, 2.0
    %v490 = vmul.f32 %v474, 2.0
    %v491 = vmul.f32 %v475, 2.0
    %v492 = vmul.f32 %v476, 2.0
    %v493 = vmul.f32 %v477, 2.0
    %v494 = vmul.f32 %v478, 2.0
    %v495 = vmul.f32 %v479, 2.0
    %v496 = vmul.f32 %v480, 2.0
    %v497 = vmul.f32 %v481, 2.0
    %v498 = vmul.f32 %v482, 2.0
    %v499 = vmul.f32 %v483, 2.0
    %v500 = vsub.f32 1.0, %v484
    %v501 = vsub.f32 1.0, %v485
    %v502 = vsub.f32 1.0, %v486
    %v503 = vsub.f32 1.0, %v487
    %v504 = vsub.f32 1.0, %v488
    %v505 = vsub.f32 1.0, %v489
    %v506 = vsub.f32 1.0, %v490
    %v507 = vsub.f32 1.0, %v491
    %v508 = vsub.f32 1.0, %v492
    %v509 = vsub.f32 1.0, %v493
    %v510 = vsub.f32 1.0, %v494
    %v511 = vsub.f32 1.0, %v495
    %v512 = vsub.f32 1.0, %v496
    %v513 = vsub.f32 1.0, %v497
    %v514 = vsub.f32 1.0, %v498
    %v515 = vsub.f32 1.0, %v499
    %v516 = vmul.f32 %v324, %v500
    %v517 = vmul.f32 %v353, %v501
    %v518 = vmul.f32 %v326, %v502
    %v519 = vmul.f32 %v355, %v503
    %v520 = vmul.f32 %v329, %v504
    %v521 = vmul.f32 %v358, %v505
    %v522 = vmul.f32 %v331, %v506
    %v523 = vmul.f32 %v360, %v507
    %v524 = vmul.f32 %v334, %v508
    %v525 = vmul.f32 %v363, %v509
    %v526 = vmul.f32 %v336, %v510
    %v527 = vmul.f32 %v365, %v511
    %v528 = vmul.f32 %v339, %v512
    %v529 = vmul.f32 %v368, %v513
    %v530 = vmul.f32 %v341, %v514
    %v531 = vmul.f32 %v370, %v515
    %v532 = vpack.c.bf16 %v518, %v516
    %v533 = vpack.c.bf16 %v519, %v517
    %v534 = vpack.c.bf16 %v522, %v520
    %v535 = vpack.c.bf16 %v523, %v521
    %v536 = vpack.c.bf16 %v526, %v524
    %v537 = vpack.c.bf16 %v527, %v525
    %v538 = vpack.c.bf16 %v530, %v528
    %v539 = vpack.c.bf16 %v531, %v529
    %v540 = vld [vmem:[%s5] sm:$0xf]
    %v541 = vld [vmem:[%s5 + $0x4] sm:$0xf]
    %v542 = vld [vmem:[%s5 + $0x8] sm:$0xf]
    %v543 = vld [vmem:[%s5 + $0xc] sm:$0xf]
    %v544 = vld [vmem:[%s5 + $0x10] sm:$0xf]
    %v545 = vld [vmem:[%s5 + $0x14] sm:$0xf]
    %v546 = vld [vmem:[%s5 + $0x18] sm:$0xf]
    %v547 = vld [vmem:[%s5 + $0x1c] sm:$0xf]
    %v548 = vld [vmem:[%s5 + $0x20] sm:$0xf]
    %v549 = vld [vmem:[%s5 + $0x24] sm:$0xf]
    %v550 = vld [vmem:[%s5 + $0x28] sm:$0xf]
    %v551 = vld [vmem:[%s5 + $0x2c] sm:$0xf]
    %v552 = vld [vmem:[%s5 + $0x30] sm:$0xf]
    %v553 = vld [vmem:[%s5 + $0x34] sm:$0xf]
    %v554 = vld [vmem:[%s5 + $0x38] sm:$0xf]
    %v555 = vld [vmem:[%s5 + $0x3c] sm:$0xf]
    %v556 = vld [vmem:[%s5 + $0x40] sm:$0xf]
    %v557 = vld [vmem:[%s5 + $0x44] sm:$0xf]
    %v558 = vld [vmem:[%s5 + $0x48] sm:$0xf]
    %v559 = vld [vmem:[%s5 + $0x4c] sm:$0xf]
    %v560 = vld [vmem:[%s5 + $0x50] sm:$0xf]
    %v561 = vld [vmem:[%s5 + $0x54] sm:$0xf]
    %v562 = vld [vmem:[%s5 + $0x58] sm:$0xf]
    %v563 = vld [vmem:[%s5 + $0x5c] sm:$0xf]
    %v564 = vld [vmem:[%s5 + $0x60] sm:$0xf]
    %v565 = vld [vmem:[%s5 + $0x64] sm:$0xf]
    %v566 = vld [vmem:[%s5 + $0x68] sm:$0xf]
    %v567 = vld [vmem:[%s5 + $0x6c] sm:$0xf]
    %v568 = vld [vmem:[%s5 + $0x70] sm:$0xf]
    %v569 = vld [vmem:[%s5 + $0x74] sm:$0xf]
    %v570 = vld [vmem:[%s5 + $0x78] sm:$0xf]
    %v571 = vld [vmem:[%s5 + $0x7c] sm:$0xf]
    %v604 = vunpack.c.l.b16 %v540
    %v605 = vunpack.c.l.b16 %v541
    %v606 = vunpack.c.l.b16 %v542
    %v607 = vunpack.c.l.b16 %v543
    %v608 = vunpack.c.l.b16 %v544
    %v609 = vunpack.c.l.b16 %v545
    %v610 = vunpack.c.l.b16 %v546
    %v611 = vunpack.c.l.b16 %v547
    %v612 = vunpack.c.l.b16 %v548
    %v613 = vunpack.c.l.b16 %v549
    %v614 = vunpack.c.l.b16 %v550
    %v615 = vunpack.c.l.b16 %v551
    %v616 = vunpack.c.l.b16 %v552
    %v617 = vunpack.c.l.b16 %v553
    %v618 = vunpack.c.l.b16 %v554
    %v619 = vunpack.c.l.b16 %v555
    %v620 = vunpack.c.l.b16 %v556
    %v621 = vunpack.c.l.b16 %v557
    %v622 = vunpack.c.l.b16 %v558
    %v623 = vunpack.c.l.b16 %v559
    %v624 = vunpack.c.l.b16 %v560
    %v625 = vunpack.c.l.b16 %v561
    %v626 = vunpack.c.l.b16 %v562
    %v627 = vunpack.c.l.b16 %v563
    %v628 = vunpack.c.l.b16 %v564
    %v629 = vunpack.c.l.b16 %v565
    %v630 = vunpack.c.l.b16 %v566
    %v631 = vunpack.c.l.b16 %v567
    %v632 = vunpack.c.l.b16 %v568
    %v633 = vunpack.c.l.b16 %v569
    %v634 = vunpack.c.l.b16 %v570
    %v635 = vunpack.c.l.b16 %v571
    %v636 = vpack.c.b16 %v605, %v604
    %v637 = vpack.c.b16 %v607, %v606
    %v638 = vpack.c.b16 %v609, %v608
    %v639 = vpack.c.b16 %v611, %v610
    %v640 = vpack.c.b16 %v613, %v612
    %v641 = vpack.c.b16 %v615, %v614
    %v642 = vpack.c.b16 %v617, %v616
    %v643 = vpack.c.b16 %v619, %v618
    %v644 = vpack.c.b16 %v621, %v620
    %v645 = vpack.c.b16 %v623, %v622
    %v646 = vpack.c.b16 %v625, %v624
    %v647 = vpack.c.b16 %v627, %v626
    %v648 = vpack.c.b16 %v629, %v628
    %v649 = vpack.c.b16 %v631, %v630
    %v650 = vpack.c.b16 %v633, %v632
    %v651 = vpack.c.b16 %v635, %v634
    %668 = vmatpush.bf16.msra.mxu0 %v643
    %669 = vmatpush.bf16.msra.mxu0 %v642
    %670 = vmatpush.bf16.msra.mxu0 %v641
    %671 = vmatpush.bf16.msra.mxu0 %v640
    %672 = vmatpush.bf16.msra.mxu0 %v639
    %673 = vmatpush.bf16.msra.mxu0 %v638
    %674 = vmatpush.bf16.msra.mxu0 %v637
    %675 = vmatpush.bf16.msra.mxu0 %v636
    %676 = vmatmul.bf16.gmra.mxu0 %v532
    %v677 = vpop.f32.mrf.mxu0
    %v678 = vadd.f32 0.0, %v677
    %v679 = vpop.f32.mrf.mxu0
    %v680 = vadd.f32 0.0, %v679
    %681 = vmatmul.bf16.gmra.mxu0 %v534
    %v682 = vpop.f32.mrf.mxu0
    %v683 = vadd.f32 0.0, %v682
    %v684 = vpop.f32.mrf.mxu0
    %v685 = vadd.f32 0.0, %v684
    %686 = vmatmul.bf16.gmra.mxu0 %v536
    %v687 = vpop.f32.mrf.mxu0
    %v688 = vadd.f32 0.0, %v687
    %v689 = vpop.f32.mrf.mxu0
    %v690 = vadd.f32 0.0, %v689
    %691 = vmatmul.bf16.gmra.mxu0 %v538
    %v692 = vpop.f32.mrf.mxu0
    %v693 = vadd.f32 0.0, %v692
    %v694 = vpop.f32.mrf.mxu0
    %v695 = vadd.f32 0.0, %v694
    %696 = vdwg.mxu0
    %697 = vmatpush.bf16.msra.mxu0 %v651
    %698 = vmatpush.bf16.msra.mxu0 %v650
    %699 = vmatpush.bf16.msra.mxu0 %v649
    %700 = vmatpush.bf16.msra.mxu0 %v648
    %701 = vmatpush.bf16.msra.mxu0 %v647
    %702 = vmatpush.bf16.msra.mxu0 %v646
    %703 = vmatpush.bf16.msra.mxu0 %v645
    %704 = vmatpush.bf16.msra.mxu0 %v644
    %705 = vmatmul.bf16.gmra.mxu0 %v533
    %v706 = vpop.f32.mrf.mxu0
    %v707 = vadd.f32 %v678, %v706
    %v708 = vpop.f32.mrf.mxu0
    %v709 = vadd.f32 %v680, %v708
    %710 = vmatmul.bf16.gmra.mxu0 %v535
    %v711 = vpop.f32.mrf.mxu0
    %v712 = vadd.f32 %v683, %v711
    %v713 = vpop.f32.mrf.mxu0
    %v714 = vadd.f32 %v685, %v713
    %715 = vmatmul.bf16.gmra.mxu0 %v537
    %v716 = vpop.f32.mrf.mxu0
    %v717 = vadd.f32 %v688, %v716
    %v718 = vpop.f32.mrf.mxu0
    %v719 = vadd.f32 %v690, %v718
    %720 = vmatmul.bf16.gmra.mxu0 %v539
    %v721 = vpop.f32.mrf.mxu0
    %v722 = vadd.f32 %v693, %v721
    %v723 = vpop.f32.mrf.mxu0
    %v724 = vadd.f32 %v695, %v723
    %725 = vdwg.mxu0
    %v726 = vadd.f32 %v28, %v707
    %v727 = vadd.f32 %v29, %v709
    %v728 = vadd.f32 %v30, %v712
    %v729 = vadd.f32 %v31, %v714
    %v730 = vadd.f32 %v32, %v717
    %v731 = vadd.f32 %v33, %v719
    %v732 = vadd.f32 %v34, %v722
    %v733 = vadd.f32 %v35, %v724
    %v734 = vld [vmem:[%s6] sm:$0x1]
    %v736 = vperm.slane %v734, 0
    %v738 = vadd.f32 %v726, %v736
    %v739 = vadd.f32 %v727, %v736
    %v740 = vadd.f32 %v728, %v736
    %v741 = vadd.f32 %v729, %v736
    %v742 = vadd.f32 %v730, %v736
    %v743 = vadd.f32 %v731, %v736
    %v744 = vadd.f32 %v732, %v736
    %v745 = vadd.f32 %v733, %v736
    %746 = vst.msk [vmem:[#allocation2] sm:$0xff] %vm38, %v738
    %747 = vst.msk [vmem:[#allocation2 + $0x8] sm:$0xff] %vm38, %v739
    %748 = vst.msk [vmem:[#allocation2 + $0x10] sm:$0xff] %vm38, %v740
    %749 = vst.msk [vmem:[#allocation2 + $0x18] sm:$0xff] %vm38, %v741
    %750 = vst.msk [vmem:[#allocation2 + $0x20] sm:$0xff] %vm38, %v742
    %751 = vst.msk [vmem:[#allocation2 + $0x28] sm:$0xff] %vm38, %v743
    %752 = vst.msk [vmem:[#allocation2 + $0x30] sm:$0xff] %vm38, %v744
    %753 = vst.msk [vmem:[#allocation2 + $0x38] sm:$0xff] %vm38, %v745
    // Predicated region
    $region30: #{tpu_custom_call.1} parent=1 // pred_check
      _
    $region31: #{tpu_custom_call.1} parent=1 // pred_check_branch
      %755 = sbr.rel (0) target = $region33
    $region32: #{tpu_custom_call.1} parent=1 // pred_region
      %757 = vsyncadd [#allocation3], 0
      %s758 = sshll.u32 [#allocation2], 4
      %s759 = int_to_ptr.vmem [resolvable:$true] %s758
      %s760 = sshll.u32 %s7, 4
      %s761 = int_to_ptr.hbm [resolvable:$true] %s760
      %766 = dma.vmem_to_hbm [thread:$0]  %s759, 1024, %s761, [#allocation3], 128, 128, 8
    $region33: #{tpu_custom_call.1} parent=1 // pred_fallthru
      _
    // Predicated region
    $region34: #{tpu_custom_call.1} parent=1 // pred_check
      _
    $region35: #{tpu_custom_call.1} parent=1 // pred_check_branch
      %768 = sbr.rel (0) target = $region37
    $region36: #{tpu_custom_call.1} parent=1 // pred_region
      %770 = dma.done [#allocation3], 1024
    $region37: #{tpu_custom_call.1} parent=1 // pred_fallthru
      _
    %771 = vsyncpa [#allocation3], 1

// kernel: tpu_custom_call.1
$region0: #{tpu_custom_call.1}
  #allocation0 [shape = 'u32[]', space=smem, size = 0x4, offset = 0x4, fixed_abs, tag = 'smem constant byte address 0x4 - core index']
  #allocation1 [shape = 'u32[72,128]{1,0:T(1,128)}', space=vmem, size = 0x9000, scoped, tag = 'internal scratch']
  %s0 = inlined_call_operand.vmem [shape: f32[64,64], index: 0, kind: input, shape index: {}]
  %s1 = inlined_call_operand.vmem [shape: f32[1,64], index: 1, kind: input, shape index: {}]
  %s2 = inlined_call_operand.vmem [shape: f32[1,64], index: 2, kind: input, shape index: {}]
  %s3 = inlined_call_operand.vmem [shape: bf16[64,256], index: 3, kind: input, shape index: {}]
  %s4 = inlined_call_operand.vmem [shape: f32[1,256], index: 4, kind: input, shape index: {}]
  %s5 = inlined_call_operand.vmem [shape: bf16[256,64], index: 5, kind: input, shape index: {}]
  %s6 = inlined_call_operand.vmem [shape: f32[1,64], index: 6, kind: input, shape index: {}]
  %s7 = inlined_call_operand.hbm [shape: f32[64,64], index: 7, kind: output, shape index: {}]
  %s8 = sld [smem:[#allocation0]]
  $region38: #{tpu_custom_call.1} parent=0
    _
  %s10 = ssub.s32 1, %s8
  %s11 = scalar_select 0, %s10, %s8
  $region1: #{tpu_custom_call.1} parent=0
    #allocation2 [shape = 'u8[32768]{0}', space=vmem, size = 0x8000, scoped, tag = 'output window, operand 0, single buffered']
    #allocation3 [shape = 's32[1]{0}', space=sflag, size = 0x4, scoped, tag = 'scoped memory for tpu_custom_call.1']
    %12 = vsyncpa [#allocation3], 0
    // Predicated region
    $region2: #{tpu_custom_call.1} parent=1 // pred_check
      _
    $region3: #{tpu_custom_call.1} parent=1 // pred_check_branch
      %14 = sbr.rel (0) target = $region5
    $region4: #{tpu_custom_call.1} parent=1 // pred_region
      _
    $region5: #{tpu_custom_call.1} parent=1 // pred_fallthru
      _
    // Predicated region
    $region6: #{tpu_custom_call.1} parent=1 // pred_check
      _
    $region7: #{tpu_custom_call.1} parent=1 // pred_check_branch
      %16 = sbr.rel (0) target = $region9
    $region8: #{tpu_custom_call.1} parent=1 // pred_region
      _
    $region9: #{tpu_custom_call.1} parent=1 // pred_fallthru
      _
    // Predicated region
    $region10: #{tpu_custom_call.1} parent=1 // pred_check
      _
    $region11: #{tpu_custom_call.1} parent=1 // pred_check_branch
      %18 = sbr.rel (0) target = $region13
    $region12: #{tpu_custom_call.1} parent=1 // pred_region
      _
    $region13: #{tpu_custom_call.1} parent=1 // pred_fallthru
      _
    // Predicated region
    $region14: #{tpu_custom_call.1} parent=1 // pred_check
      _
    $region15: #{tpu_custom_call.1} parent=1 // pred_check_branch
      %20 = sbr.rel (0) target = $region17
    $region16: #{tpu_custom_call.1} parent=1 // pred_region
      _
    $region17: #{tpu_custom_call.1} parent=1 // pred_fallthru
      _
    // Predicated region
    $region18: #{tpu_custom_call.1} parent=1 // pred_check
      _
    $region19: #{tpu_custom_call.1} parent=1 // pred_check_branch
      %22 = sbr.rel (0) target = $region21
    $region20: #{tpu_custom_call.1} parent=1 // pred_region
      _
    $region21: #{tpu_custom_call.1} parent=1 // pred_fallthru
      _
    // Predicated region
    $region22: #{tpu_custom_call.1} parent=1 // pred_check
      _
    $region23: #{tpu_custom_call.1} parent=1 // pred_check_branch
      %24 = sbr.rel (0) target = $region25
    $region24: #{tpu_custom_call.1} parent=1 // pred_region
      _
    $region25: #{tpu_custom_call.1} parent=1 // pred_fallthru
      _
    // Predicated region
    $region26: #{tpu_custom_call.1} parent=1 // pred_check
      _
    $region27: #{tpu_custom_call.1} parent=1 // pred_check_branch
      %26 = sbr.rel (0) target = $region29
    $region28: #{tpu_custom_call.1} parent=1 // pred_region
      _
    $region29: #{tpu_custom_call.1} parent=1 // pred_fallthru
      _
    %v28 = vld [vmem:[%s0] sm:$0xff]
    %v29 = vld [vmem:[%s0 + $0x8] sm:$0xff]
    %v30 = vld [vmem:[%s0 + $0x10] sm:$0xff]
    %v31 = vld [vmem:[%s0 + $0x18] sm:$0xff]
    %v32 = vld [vmem:[%s0 + $0x20] sm:$0xff]
    %v33 = vld [vmem:[%s0 + $0x28] sm:$0xff]
    %v34 = vld [vmem:[%s0 + $0x30] sm:$0xff]
    %v35 = vld [vmem:[%s0 + $0x38] sm:$0xff]
    %v36 = vld [vmem:[%s1] sm:$0x1]
    %v37 = vld [vmem:[%s2] sm:$0x1]
    %vm38 = vcmask 523264
    %v39 = vsel %vm38, %v28, 0.0
    %40 = vadd.xlane.f32.xlu0 %v39
    %v41 = vpop.xlane.xlu0 %40
    %v42 = vsel %vm38, %v29, 0.0
    %43 = vadd.xlane.f32.xlu0 %v42
    %v44 = vpop.xlane.xlu0 %43
    %v45 = vsel %vm38, %v30, 0.0
    %46 = vadd.xlane.f32.xlu0 %v45
    %v47 = vpop.xlane.xlu0 %46
    %v48 = vsel %vm38, %v31, 0.0
    %49 = vadd.xlane.f32.xlu0 %v48
    %v50 = vpop.xlane.xlu0 %49
    %v51 = vsel %vm38, %v32, 0.0
    %52 = vadd.xlane.f32.xlu0 %v51
    %v53 = vpop.xlane.xlu0 %52
    %v54 = vsel %vm38, %v33, 0.0
    %55 = vadd.xlane.f32.xlu0 %v54
    %v56 = vpop.xlane.xlu0 %55
    %v57 = vsel %vm38, %v34, 0.0
    %58 = vadd.xlane.f32.xlu0 %v57
    %v59 = vpop.xlane.xlu0 %58
    %v60 = vsel %vm38, %v35, 0.0
    %61 = vadd.xlane.f32.xlu0 %v60
    %v62 = vpop.xlane.xlu0 %61
    %v63 = vrcp.pop 64.0
    %v64 = vmul.f32 64.0, %v63
    %v65 = vsub.f32 1.0, %v64
    %v66 = vmul.f32 %v63, %v65
    %v67 = vadd.f32 %v63, %v66
    %vm68 = vweird.f32 %v63
    %v69 = vsel %vm68, %v63, %v67
    %v70 = vmul.f32 %v41, %v69
    %v71 = vmul.f32 %v44, %v69
    %v72 = vmul.f32 %v47, %v69
    %v73 = vmul.f32 %v50, %v69
    %v74 = vmul.f32 %v53, %v69
    %v75 = vmul.f32 %v56, %v69
    %v76 = vmul.f32 %v59, %v69
    %v77 = vmul.f32 %v62, %v69
    %v78 = vsub.f32 %v28, %v70
    %v79 = vsub.f32 %v29, %v71
    %v80 = vsub.f32 %v30, %v72
    %v81 = vsub.f32 %v31, %v73
    %v82 = vsub.f32 %v32, %v74
    %v83 = vsub.f32 %v33, %v75
    %v84 = vsub.f32 %v34, %v76
    %v85 = vsub.f32 %v35, %v77
    %v86 = vmul.f32 %v78, %v78
    %v87 = vmul.f32 %v79, %v79
    %v88 = vmul.f32 %v80, %v80
    %v89 = vmul.f32 %v81, %v81
    %v90 = vmul.f32 %v82, %v82
    %v91 = vmul.f32 %v83, %v83
    %v92 = vmul.f32 %v84, %v84
    %v93 = vmul.f32 %v85, %v85
    %v94 = vsel %vm38, %v86, 0.0
    %95 = vadd.xlane.f32.xlu0 %v94
    %v96 = vpop.xlane.xlu0 %95
    %v97 = vsel %vm38, %v87, 0.0
    %98 = vadd.xlane.f32.xlu0 %v97
    %v99 = vpop.xlane.xlu0 %98
    %v100 = vsel %vm38, %v88, 0.0
    %101 = vadd.xlane.f32.xlu0 %v100
    %v102 = vpop.xlane.xlu0 %101
    %v103 = vsel %vm38, %v89, 0.0
    %104 = vadd.xlane.f32.xlu0 %v103
    %v105 = vpop.xlane.xlu0 %104
    %v106 = vsel %vm38, %v90, 0.0
    %107 = vadd.xlane.f32.xlu0 %v106
    %v108 = vpop.xlane.xlu0 %107
    %v109 = vsel %vm38, %v91, 0.0
    %110 = vadd.xlane.f32.xlu0 %v109
    %v111 = vpop.xlane.xlu0 %110
    %v112 = vsel %vm38, %v92, 0.0
    %113 = vadd.xlane.f32.xlu0 %v112
    %v114 = vpop.xlane.xlu0 %113
    %v115 = vsel %vm38, %v93, 0.0
    %116 = vadd.xlane.f32.xlu0 %v115
    %v117 = vpop.xlane.xlu0 %116
    %v118 = vmul.f32 %v96, %v69
    %v119 = vmul.f32 %v99, %v69
    %v120 = vmul.f32 %v102, %v69
    %v121 = vmul.f32 %v105, %v69
    %v122 = vmul.f32 %v108, %v69
    %v123 = vmul.f32 %v111, %v69
    %v124 = vmul.f32 %v114, %v69
    %v125 = vmul.f32 %v117, %v69
    %v126 = vadd.f32 %v118, 1e-05
    %v127 = vadd.f32 %v119, 1e-05
    %v128 = vadd.f32 %v120, 1e-05
    %v129 = vadd.f32 %v121, 1e-05
    %v130 = vadd.f32 %v122, 1e-05
    %v131 = vadd.f32 %v123, 1e-05
    %v132 = vadd.f32 %v124, 1e-05
    %v133 = vadd.f32 %v125, 1e-05
    %v134 = vrsqrt.pop %v126
    %v135 = vmul.f32 %v134, %v126
    %v136 = vmul.f32 %v135, %v134
    %v137 = vmul.f32 0.5, %v136
    %v138 = vsub.f32 1.5, %v137
    %v139 = vmul.f32 %v134, %v138
    %vm140 = vweird.f32 %v126
    %vm141 = vweird.f32 %v134
    %vm142 = vmor %vm140, %vm141
    %v143 = vsel %vm142, %v134, %v139
    %v144 = vrsqrt.pop %v127
    %v145 = vmul.f32 %v144, %v127
    %v146 = vmul.f32 %v145, %v144
    %v147 = vmul.f32 0.5, %v146
    %v148 = vsub.f32 1.5, %v147
    %v149 = vmul.f32 %v144, %v148
    %vm150 = vweird.f32 %v127
    %vm151 = vweird.f32 %v144
    %vm152 = vmor %vm150, %vm151
    %v153 = vsel %vm152, %v144, %v149
    %v154 = vrsqrt.pop %v128
    %v155 = vmul.f32 %v154, %v128
    %v156 = vmul.f32 %v155, %v154
    %v157 = vmul.f32 0.5, %v156
    %v158 = vsub.f32 1.5, %v157
    %v159 = vmul.f32 %v154, %v158
    %vm160 = vweird.f32 %v128
    %vm161 = vweird.f32 %v154
    %vm162 = vmor %vm160, %vm161
    %v163 = vsel %vm162, %v154, %v159
    %v164 = vrsqrt.pop %v129
    %v165 = vmul.f32 %v164, %v129
    %v166 = vmul.f32 %v165, %v164
    %v167 = vmul.f32 0.5, %v166
    %v168 = vsub.f32 1.5, %v167
    %v169 = vmul.f32 %v164, %v168
    %vm170 = vweird.f32 %v129
    %vm171 = vweird.f32 %v164
    %vm172 = vmor %vm170, %vm171
    %v173 = vsel %vm172, %v164, %v169
    %v174 = vrsqrt.pop %v130
    %v175 = vmul.f32 %v174, %v130
    %v176 = vmul.f32 %v175, %v174
    %v177 = vmul.f32 0.5, %v176
    %v178 = vsub.f32 1.5, %v177
    %v179 = vmul.f32 %v174, %v178
    %vm180 = vweird.f32 %v130
    %vm181 = vweird.f32 %v174
    %vm182 = vmor %vm180, %vm181
    %v183 = vsel %vm182, %v174, %v179
    %v184 = vrsqrt.pop %v131
    %v185 = vmul.f32 %v184, %v131
    %v186 = vmul.f32 %v185, %v184
    %v187 = vmul.f32 0.5, %v186
    %v188 = vsub.f32 1.5, %v187
    %v189 = vmul.f32 %v184, %v188
    %vm190 = vweird.f32 %v131
    %vm191 = vweird.f32 %v184
    %vm192 = vmor %vm190, %vm191
    %v193 = vsel %vm192, %v184, %v189
    %v194 = vrsqrt.pop %v132
    %v195 = vmul.f32 %v194, %v132
    %v196 = vmul.f32 %v195, %v194
    %v197 = vmul.f32 0.5, %v196
    %v198 = vsub.f32 1.5, %v197
    %v199 = vmul.f32 %v194, %v198
    %vm200 = vweird.f32 %v132
    %vm201 = vweird.f32 %v194
    %vm202 = vmor %vm200, %vm201
    %v203 = vsel %vm202, %v194, %v199
    %v204 = vrsqrt.pop %v133
    %v205 = vmul.f32 %v204, %v133
    %v206 = vmul.f32 %v205, %v204
    %v207 = vmul.f32 0.5, %v206
    %v208 = vsub.f32 1.5, %v207
    %v209 = vmul.f32 %v204, %v208
    %vm210 = vweird.f32 %v133
    %vm211 = vweird.f32 %v204
    %vm212 = vmor %vm210, %vm211
    %v213 = vsel %vm212, %v204, %v209
    %v214 = vmul.f32 %v78, %v143
    %v215 = vmul.f32 %v79, %v153
    %v216 = vmul.f32 %v80, %v163
    %v217 = vmul.f32 %v81, %v173
    %v218 = vmul.f32 %v82, %v183
    %v219 = vmul.f32 %v83, %v193
    %v220 = vmul.f32 %v84, %v203
    %v221 = vmul.f32 %v85, %v213
    %v223 = vperm.slane %v36, 0
    %v225 = vmul.f32 %v214, %v223
    %v226 = vmul.f32 %v215, %v223
    %v227 = vmul.f32 %v216, %v223
    %v228 = vmul.f32 %v217, %v223
    %v229 = vmul.f32 %v218, %v223
    %v230 = vmul.f32 %v219, %v223
    %v231 = vmul.f32 %v220, %v223
    %v232 = vmul.f32 %v221, %v223
    %v234 = vperm.slane %v37, 0
    %v236 = vadd.f32 %v225, %v234
    %v237 = vadd.f32 %v226, %v234
    %v238 = vadd.f32 %v227, %v234
    %v239 = vadd.f32 %v228, %v234
    %v240 = vadd.f32 %v229, %v234
    %v241 = vadd.f32 %v230, %v234
    %v242 = vadd.f32 %v231, %v234
    %v243 = vadd.f32 %v232, %v234
    %v244 = vpack.c.bf16 %v237, %v236
    %v245 = vpack.c.bf16 %v239, %v238
    %v246 = vpack.c.bf16 %v241, %v240
    %v247 = vpack.c.bf16 %v243, %v242
    %v248 = vld [vmem:[%s3] sm:$0xff]
    %v249 = vld [vmem:[%s3 + $0x8] sm:$0xff]
    %v250 = vld [vmem:[%s3 + $0x10] sm:$0xff]
    %v251 = vld [vmem:[%s3 + $0x18] sm:$0xff]
    %v252 = vld [vmem:[%s3 + $0x20] sm:$0xff]
    %v253 = vld [vmem:[%s3 + $0x28] sm:$0xff]
    %v254 = vld [vmem:[%s3 + $0x30] sm:$0xff]
    %v255 = vld [vmem:[%s3 + $0x38] sm:$0xff]
    %v256 = vld [vmem:[%s4] sm:$0x3]
    %v258 = vperm.slane %v256, 0
    %v259 = vperm.slane %v256, 1
    %v270 = vunpack.c.l.b16 %v248
    %v271 = vunpack.c.h.b16 %v248
    %v272 = vunpack.c.l.b16 %v249
    %v273 = vunpack.c.h.b16 %v249
    %v274 = vunpack.c.l.b16 %v250
    %v275 = vunpack.c.h.b16 %v250
    %v276 = vunpack.c.l.b16 %v251
    %v277 = vunpack.c.h.b16 %v251
    %v278 = vunpack.c.l.b16 %v252
    %v279 = vunpack.c.h.b16 %v252
    %v280 = vunpack.c.l.b16 %v253
    %v281 = vunpack.c.h.b16 %v253
    %v282 = vunpack.c.l.b16 %v254
    %v283 = vunpack.c.h.b16 %v254
    %v284 = vunpack.c.l.b16 %v255
    %v285 = vunpack.c.h.b16 %v255
    %v286 = vpack.c.b16 %v272, %v270
    %v287 = vpack.c.b16 %v273, %v271
    %v288 = vpack.c.b16 %v276, %v274
    %v289 = vpack.c.b16 %v277, %v275
    %v290 = vpack.c.b16 %v280, %v278
    %v291 = vpack.c.b16 %v281, %v279
    %v292 = vpack.c.b16 %v284, %v282
    %v293 = vpack.c.b16 %v285, %v283
    %v303 = vsel %vm38, %v244, 0
    %v306 = vsel %vm38, %v245, 0
    %v309 = vsel %vm38, %v246, 0
    %v312 = vsel %vm38, %v247, 0
    %314 = vmatpush.bf16.msra.mxu0 0
    %315 = vmatpush.bf16.msra.mxu0 0
    %316 = vmatpush.bf16.msra.mxu0 0
    %317 = vmatpush.bf16.msra.mxu0 0
    %318 = vmatpush.bf16.msra.mxu0 %v292
    %319 = vmatpush.bf16.msra.mxu0 %v290
    %320 = vmatpush.bf16.msra.mxu0 %v288
    %321 = vmatpush.bf16.msra.mxu0 %v286
    %322 = vmatmul.bf16.gmra.mxu0 %v303
    %v323 = vpop.f32.mrf.mxu0
    %v324 = vadd.f32 %v258, %v323
    %v325 = vpop.f32.mrf.mxu0
    %v326 = vadd.f32 %v258, %v325
    %327 = vmatmul.bf16.gmra.mxu0 %v306
    %v328 = vpop.f32.mrf.mxu0
    %v329 = vadd.f32 %v258, %v328
    %v330 = vpop.f32.mrf.mxu0
    %v331 = vadd.f32 %v258, %v330
    %332 = vmatmul.bf16.gmra.mxu0 %v309
    %v333 = vpop.f32.mrf.mxu0
    %v334 = vadd.f32 %v258, %v333
    %v335 = vpop.f32.mrf.mxu0
    %v336 = vadd.f32 %v258, %v335
    %337 = vmatmul.bf16.gmra.mxu0 %v312
    %v338 = vpop.f32.mrf.mxu0
    %v339 = vadd.f32 %v258, %v338
    %v340 = vpop.f32.mrf.mxu0
    %v341 = vadd.f32 %v258, %v340
    %342 = vdwg.mxu0
    %343 = vmatpush.bf16.msra.mxu0 0
    %344 = vmatpush.bf16.msra.mxu0 0
    %345 = vmatpush.bf16.msra.mxu0 0
    %346 = vmatpush.bf16.msra.mxu0 0
    %347 = vmatpush.bf16.msra.mxu0 %v293
    %348 = vmatpush.bf16.msra.mxu0 %v291
    %349 = vmatpush.bf16.msra.mxu0 %v289
    %350 = vmatpush.bf16.msra.mxu0 %v287
    %351 = vmatmul.bf16.gmra.mxu0 %v303
    %v352 = vpop.f32.mrf.mxu0
    %v353 = vadd.f32 %v259, %v352
    %v354 = vpop.f32.mrf.mxu0
    %v355 = vadd.f32 %v259, %v354
    %356 = vmatmul.bf16.gmra.mxu0 %v306
    %v357 = vpop.f32.mrf.mxu0
    %v358 = vadd.f32 %v259, %v357
    %v359 = vpop.f32.mrf.mxu0
    %v360 = vadd.f32 %v259, %v359
    %361 = vmatmul.bf16.gmra.mxu0 %v309
    %v362 = vpop.f32.mrf.mxu0
    %v363 = vadd.f32 %v259, %v362
    %v364 = vpop.f32.mrf.mxu0
    %v365 = vadd.f32 %v259, %v364
    %366 = vmatmul.bf16.gmra.mxu0 %v312
    %v367 = vpop.f32.mrf.mxu0
    %v368 = vadd.f32 %v259, %v367
    %v369 = vpop.f32.mrf.mxu0
    %v370 = vadd.f32 %v259, %v369
    %371 = vdwg.mxu0
    %v372 = vmin.f32 %v324, 20.0
    %v373 = vmin.f32 %v353, 20.0
    %v374 = vmin.f32 %v326, 20.0
    %v375 = vmin.f32 %v355, 20.0
    %v376 = vmin.f32 %v329, 20.0
    %v377 = vmin.f32 %v358, 20.0
    %v378 = vmin.f32 %v331, 20.0
    %v379 = vmin.f32 %v360, 20.0
    %v380 = vmin.f32 %v334, 20.0
    %v381 = vmin.f32 %v363, 20.0
    %v382 = vmin.f32 %v336, 20.0
    %v383 = vmin.f32 %v365, 20.0
    %v384 = vmin.f32 %v339, 20.0
    %v385 = vmin.f32 %v368, 20.0
    %v386 = vmin.f32 %v341, 20.0
    %v387 = vmin.f32 %v370, 20.0
    %v388 = vmul.f32 %v372, 1.442695
    %v389 = vpow.pop %v388
    %v390 = vmul.f32 %v373, 1.442695
    %v391 = vpow.pop %v390
    %v392 = vmul.f32 %v374, 1.442695
    %v393 = vpow.pop %v392
    %v394 = vmul.f32 %v375, 1.442695
    %v395 = vpow.pop %v394
    %v396 = vmul.f32 %v376, 1.442695
    %v397 = vpow.pop %v396
    %v398 = vmul.f32 %v377, 1.442695
    %v399 = vpow.pop %v398
    %v400 = vmul.f32 %v378, 1.442695
    %v401 = vpow.pop %v400
    %v402 = vmul.f32 %v379, 1.442695
    %v403 = vpow.pop %v402
    %v404 = vmul.f32 %v380, 1.442695
    %v405 = vpow.pop %v404
    %v406 = vmul.f32 %v381, 1.442695
    %v407 = vpow.pop %v406
    %v408 = vmul.f32 %v382, 1.442695
    %v409 = vpow.pop %v408
    %v410 = vmul.f32 %v383, 1.442695
    %v411 = vpow.pop %v410
    %v412 = vmul.f32 %v384, 1.442695
    %v413 = vpow.pop %v412
    %v414 = vmul.f32 %v385, 1.442695
    %v415 = vpow.pop %v414
    %v416 = vmul.f32 %v386, 1.442695
    %v417 = vpow.pop %v416
    %v418 = vmul.f32 %v387, 1.442695
    %v419 = vpow.pop %v418
    %v420 = vadd.f32 %v389, 1.0
    %v421 = vadd.f32 %v391, 1.0
    %v422 = vadd.f32 %v393, 1.0
    %v423 = vadd.f32 %v395, 1.0
    %v424 = vadd.f32 %v397, 1.0
    %v425 = vadd.f32 %v399, 1.0
    %v426 = vadd.f32 %v401, 1.0
    %v427 = vadd.f32 %v403, 1.0
    %v428 = vadd.f32 %v405, 1.0
    %v429 = vadd.f32 %v407, 1.0
    %v430 = vadd.f32 %v409, 1.0
    %v431 = vadd.f32 %v411, 1.0
    %v432 = vadd.f32 %v413, 1.0
    %v433 = vadd.f32 %v415, 1.0
    %v434 = vadd.f32 %v417, 1.0
    %v435 = vadd.f32 %v419, 1.0
    %v436 = vmul.f32 %v420, %v420
    %v437 = vmul.f32 %v421, %v421
    %v438 = vmul.f32 %v422, %v422
    %v439 = vmul.f32 %v423, %v423
    %v440 = vmul.f32 %v424, %v424
    %v441 = vmul.f32 %v425, %v425
    %v442 = vmul.f32 %v426, %v426
    %v443 = vmul.f32 %v427, %v427
    %v444 = vmul.f32 %v428, %v428
    %v445 = vmul.f32 %v429, %v429
    %v446 = vmul.f32 %v430, %v430
    %v447 = vmul.f32 %v431, %v431
    %v448 = vmul.f32 %v432, %v432
    %v449 = vmul.f32 %v433, %v433
    %v450 = vmul.f32 %v434, %v434
    %v451 = vmul.f32 %v435, %v435
    %v452 = vadd.f32 %v436, 1.0
    %v453 = vadd.f32 %v437, 1.0
    %v454 = vadd.f32 %v438, 1.0
    %v455 = vadd.f32 %v439, 1.0
    %v456 = vadd.f32 %v440, 1.0
    %v457 = vadd.f32 %v441, 1.0
    %v458 = vadd.f32 %v442, 1.0
    %v459 = vadd.f32 %v443, 1.0
    %v460 = vadd.f32 %v444, 1.0
    %v461 = vadd.f32 %v445, 1.0
    %v462 = vadd.f32 %v446, 1.0
    %v463 = vadd.f32 %v447, 1.0
    %v464 = vadd.f32 %v448, 1.0
    %v465 = vadd.f32 %v449, 1.0
    %v466 = vadd.f32 %v450, 1.0
    %v467 = vadd.f32 %v451, 1.0
    %v468 = vrcp.pop %v452
    %v469 = vrcp.pop %v453
    %v470 = vrcp.pop %v454
    %v471 = vrcp.pop %v455
    %v472 = vrcp.pop %v456
    %v473 = vrcp.pop %v457
    %v474 = vrcp.pop %v458
    %v475 = vrcp.pop %v459
    %v476 = vrcp.pop %v460
    %v477 = vrcp.pop %v461
    %v478 = vrcp.pop %v462
    %v479 = vrcp.pop %v463
    %v480 = vrcp.pop %v464
    %v481 = vrcp.pop %v465
    %v482 = vrcp.pop %v466
    %v483 = vrcp.pop %v467
    %v484 = vmul.f32 %v468, 2.0
    %v485 = vmul.f32 %v469, 2.0
    %v486 = vmul.f32 %v470, 2.0
    %v487 = vmul.f32 %v471, 2.0
    %v488 = vmul.f32 %v472, 2.0
    %v489 = vmul.f32 %v473, 2.0
    %v490 = vmul.f32 %v474, 2.0
    %v491 = vmul.f32 %v475, 2.0
    %v492 = vmul.f32 %v476, 2.0
    %v493 = vmul.f32 %v477, 2.0
    %v494 = vmul.f32 %v478, 2.0
    %v495 = vmul.f32 %v479, 2.0
    %v496 = vmul.f32 %v480, 2.0
    %v497 = vmul.f32 %v481, 2.0
    %v498 = vmul.f32 %v482, 2.0
    %v499 = vmul.f32 %v483, 2.0
    %v500 = vsub.f32 1.0, %v484
    %v501 = vsub.f32 1.0, %v485
    %v502 = vsub.f32 1.0, %v486
    %v503 = vsub.f32 1.0, %v487
    %v504 = vsub.f32 1.0, %v488
    %v505 = vsub.f32 1.0, %v489
    %v506 = vsub.f32 1.0, %v490
    %v507 = vsub.f32 1.0, %v491
    %v508 = vsub.f32 1.0, %v492
    %v509 = vsub.f32 1.0, %v493
    %v510 = vsub.f32 1.0, %v494
    %v511 = vsub.f32 1.0, %v495
    %v512 = vsub.f32 1.0, %v496
    %v513 = vsub.f32 1.0, %v497
    %v514 = vsub.f32 1.0, %v498
    %v515 = vsub.f32 1.0, %v499
    %v516 = vmul.f32 %v324, %v500
    %v517 = vmul.f32 %v353, %v501
    %v518 = vmul.f32 %v326, %v502
    %v519 = vmul.f32 %v355, %v503
    %v520 = vmul.f32 %v329, %v504
    %v521 = vmul.f32 %v358, %v505
    %v522 = vmul.f32 %v331, %v506
    %v523 = vmul.f32 %v360, %v507
    %v524 = vmul.f32 %v334, %v508
    %v525 = vmul.f32 %v363, %v509
    %v526 = vmul.f32 %v336, %v510
    %v527 = vmul.f32 %v365, %v511
    %v528 = vmul.f32 %v339, %v512
    %v529 = vmul.f32 %v368, %v513
    %v530 = vmul.f32 %v341, %v514
    %v531 = vmul.f32 %v370, %v515
    %v532 = vpack.c.bf16 %v518, %v516
    %v533 = vpack.c.bf16 %v519, %v517
    %v534 = vpack.c.bf16 %v522, %v520
    %v535 = vpack.c.bf16 %v523, %v521
    %v536 = vpack.c.bf16 %v526, %v524
    %v537 = vpack.c.bf16 %v527, %v525
    %v538 = vpack.c.bf16 %v530, %v528
    %v539 = vpack.c.bf16 %v531, %v529
    %v540 = vld [vmem:[%s5] sm:$0xf]
    %v541 = vld [vmem:[%s5 + $0x4] sm:$0xf]
    %v542 = vld [vmem:[%s5 + $0x8] sm:$0xf]
    %v543 = vld [vmem:[%s5 + $0xc] sm:$0xf]
    %v544 = vld [vmem:[%s5 + $0x10] sm:$0xf]
    %v545 = vld [vmem:[%s5 + $0x14] sm:$0xf]
    %v546 = vld [vmem:[%s5 + $0x18] sm:$0xf]
    %v547 = vld [vmem:[%s5 + $0x1c] sm:$0xf]
    %v548 = vld [vmem:[%s5 + $0x20] sm:$0xf]
    %v549 = vld [vmem:[%s5 + $0x24] sm:$0xf]
    %v550 = vld [vmem:[%s5 + $0x28] sm:$0xf]
    %v551 = vld [vmem:[%s5 + $0x2c] sm:$0xf]
    %v552 = vld [vmem:[%s5 + $0x30] sm:$0xf]
    %v553 = vld [vmem:[%s5 + $0x34] sm:$0xf]
    %v554 = vld [vmem:[%s5 + $0x38] sm:$0xf]
    %v555 = vld [vmem:[%s5 + $0x3c] sm:$0xf]
    %v556 = vld [vmem:[%s5 + $0x40] sm:$0xf]
    %v557 = vld [vmem:[%s5 + $0x44] sm:$0xf]
    %v558 = vld [vmem:[%s5 + $0x48] sm:$0xf]
    %v559 = vld [vmem:[%s5 + $0x4c] sm:$0xf]
    %v560 = vld [vmem:[%s5 + $0x50] sm:$0xf]
    %v561 = vld [vmem:[%s5 + $0x54] sm:$0xf]
    %v562 = vld [vmem:[%s5 + $0x58] sm:$0xf]
    %v563 = vld [vmem:[%s5 + $0x5c] sm:$0xf]
    %v564 = vld [vmem:[%s5 + $0x60] sm:$0xf]
    %v565 = vld [vmem:[%s5 + $0x64] sm:$0xf]
    %v566 = vld [vmem:[%s5 + $0x68] sm:$0xf]
    %v567 = vld [vmem:[%s5 + $0x6c] sm:$0xf]
    %v568 = vld [vmem:[%s5 + $0x70] sm:$0xf]
    %v569 = vld [vmem:[%s5 + $0x74] sm:$0xf]
    %v570 = vld [vmem:[%s5 + $0x78] sm:$0xf]
    %v571 = vld [vmem:[%s5 + $0x7c] sm:$0xf]
    %v604 = vunpack.c.l.b16 %v540
    %v605 = vunpack.c.l.b16 %v541
    %v606 = vunpack.c.l.b16 %v542
    %v607 = vunpack.c.l.b16 %v543
    %v608 = vunpack.c.l.b16 %v544
    %v609 = vunpack.c.l.b16 %v545
    %v610 = vunpack.c.l.b16 %v546
    %v611 = vunpack.c.l.b16 %v547
    %v612 = vunpack.c.l.b16 %v548
    %v613 = vunpack.c.l.b16 %v549
    %v614 = vunpack.c.l.b16 %v550
    %v615 = vunpack.c.l.b16 %v551
    %v616 = vunpack.c.l.b16 %v552
    %v617 = vunpack.c.l.b16 %v553
    %v618 = vunpack.c.l.b16 %v554
    %v619 = vunpack.c.l.b16 %v555
    %v620 = vunpack.c.l.b16 %v556
    %v621 = vunpack.c.l.b16 %v557
    %v622 = vunpack.c.l.b16 %v558
    %v623 = vunpack.c.l.b16 %v559
    %v624 = vunpack.c.l.b16 %v560
    %v625 = vunpack.c.l.b16 %v561
    %v626 = vunpack.c.l.b16 %v562
    %v627 = vunpack.c.l.b16 %v563
    %v628 = vunpack.c.l.b16 %v564
    %v629 = vunpack.c.l.b16 %v565
    %v630 = vunpack.c.l.b16 %v566
    %v631 = vunpack.c.l.b16 %v567
    %v632 = vunpack.c.l.b16 %v568
    %v633 = vunpack.c.l.b16 %v569
    %v634 = vunpack.c.l.b16 %v570
    %v635 = vunpack.c.l.b16 %v571
    %v636 = vpack.c.b16 %v605, %v604
    %v637 = vpack.c.b16 %v607, %v606
    %v638 = vpack.c.b16 %v609, %v608
    %v639 = vpack.c.b16 %v611, %v610
    %v640 = vpack.c.b16 %v613, %v612
    %v641 = vpack.c.b16 %v615, %v614
    %v642 = vpack.c.b16 %v617, %v616
    %v643 = vpack.c.b16 %v619, %v618
    %v644 = vpack.c.b16 %v621, %v620
    %v645 = vpack.c.b16 %v623, %v622
    %v646 = vpack.c.b16 %v625, %v624
    %v647 = vpack.c.b16 %v627, %v626
    %v648 = vpack.c.b16 %v629, %v628
    %v649 = vpack.c.b16 %v631, %v630
    %v650 = vpack.c.b16 %v633, %v632
    %v651 = vpack.c.b16 %v635, %v634
    %668 = vmatpush.bf16.msra.mxu0 %v643
    %669 = vmatpush.bf16.msra.mxu0 %v642
    %670 = vmatpush.bf16.msra.mxu0 %v641
    %671 = vmatpush.bf16.msra.mxu0 %v640
    %672 = vmatpush.bf16.msra.mxu0 %v639
    %673 = vmatpush.bf16.msra.mxu0 %v638
    %674 = vmatpush.bf16.msra.mxu0 %v637
    %675 = vmatpush.bf16.msra.mxu0 %v636
    %676 = vmatmul.bf16.gmra.mxu0 %v532
    %v677 = vpop.f32.mrf.mxu0
    %v678 = vadd.f32 0.0, %v677
    %v679 = vpop.f32.mrf.mxu0
    %v680 = vadd.f32 0.0, %v679
    %681 = vmatmul.bf16.gmra.mxu0 %v534
    %v682 = vpop.f32.mrf.mxu0
    %v683 = vadd.f32 0.0, %v682
    %v684 = vpop.f32.mrf.mxu0
    %v685 = vadd.f32 0.0, %v684
    %686 = vmatmul.bf16.gmra.mxu0 %v536
    %v687 = vpop.f32.mrf.mxu0
    %v688 = vadd.f32 0.0, %v687
    %v689 = vpop.f32.mrf.mxu0
    %v690 = vadd.f32 0.0, %v689
    %691 = vmatmul.bf16.gmra.mxu0 %v538
    %v692 = vpop.f32.mrf.mxu0
    %v693 = vadd.f32 0.0, %v692
    %v694 = vpop.f32.mrf.mxu0
    %v695 = vadd.f32 0.0, %v694
    %696 = vdwg.mxu0
    %697 = vmatpush.bf16.msra.mxu0 %v651
    %698 = vmatpush.bf16.msra.mxu0 %v650
    %699 = vmatpush.bf16.msra.mxu0 %v649
    %700 = vmatpush.bf16.msra.mxu0 %v648
    %701 = vmatpush.bf16.msra.mxu0 %v647
    %702 = vmatpush.bf16.msra.mxu0 %v646
    %703 = vmatpush.bf16.msra.mxu0 %v645
    %704 = vmatpush.bf16.msra.mxu0 %v644
    %705 = vmatmul.bf16.gmra.mxu0 %v533
    %v706 = vpop.f32.mrf.mxu0
    %v707 = vadd.f32 %v678, %v706
    %v708 = vpop.f32.mrf.mxu0
    %v709 = vadd.f32 %v680, %v708
    %710 = vmatmul.bf16.gmra.mxu0 %v535
    %v711 = vpop.f32.mrf.mxu0
    %v712 = vadd.f32 %v683, %v711
    %v713 = vpop.f32.mrf.mxu0
    %v714 = vadd.f32 %v685, %v713
    %715 = vmatmul.bf16.gmra.mxu0 %v537
    %v716 = vpop.f32.mrf.mxu0
    %v717 = vadd.f32 %v688, %v716
    %v718 = vpop.f32.mrf.mxu0
    %v719 = vadd.f32 %v690, %v718
    %720 = vmatmul.bf16.gmra.mxu0 %v539
    %v721 = vpop.f32.mrf.mxu0
    %v722 = vadd.f32 %v693, %v721
    %v723 = vpop.f32.mrf.mxu0
    %v724 = vadd.f32 %v695, %v723
    %725 = vdwg.mxu0
    %v726 = vadd.f32 %v28, %v707
    %v727 = vadd.f32 %v29, %v709
    %v728 = vadd.f32 %v30, %v712
    %v729 = vadd.f32 %v31, %v714
    %v730 = vadd.f32 %v32, %v717
    %v731 = vadd.f32 %v33, %v719
    %v732 = vadd.f32 %v34, %v722
    %v733 = vadd.f32 %v35, %v724
    %v734 = vld [vmem:[%s6] sm:$0x1]
    %v736 = vperm.slane %v734, 0
    %v738 = vadd.f32 %v726, %v736
    %v739 = vadd.f32 %v727, %v736
    %v740 = vadd.f32 %v728, %v736
    %v741 = vadd.f32 %v729, %v736
    %v742 = vadd.f32 %v730, %v736
    %v743 = vadd.f32 %v731, %v736
    %v744 = vadd.f32 %v732, %v736
    %v745 = vadd.f32 %v733, %v736
    %746 = vst.msk [vmem:[#allocation2] sm:$0xff] %vm38, %v738
    %747 = vst.msk [vmem:[#allocation2 + $0x8] sm:$0xff] %vm38, %v739
    %748 = vst.msk [vmem:[#allocation2 + $0x10] sm:$0xff] %vm38, %v740
    %749 = vst.msk [vmem:[#allocation2 + $0x18] sm:$0xff] %vm38, %v741
    %750 = vst.msk [vmem:[#allocation2 + $0x20] sm:$0xff] %vm38, %v742
    %751 = vst.msk [vmem:[#allocation2 + $0x28] sm:$0xff] %vm38, %v743
    %752 = vst.msk [vmem:[#allocation2 + $0x30] sm:$0xff] %vm38, %v744
    %753 = vst.msk [vmem:[#allocation2 + $0x38] sm:$0xff] %vm38, %v745
    // Predicated region
    $region30: #{tpu_custom_call.1} parent=1 // pred_check
      _
    $region31: #{tpu_custom_call.1} parent=1 // pred_check_branch
      %755 = sbr.rel (0) target = $region33
    $region32: #{tpu_custom_call.1} parent=1 // pred_region
      %757 = vsyncadd [#allocation3], 0
      %s758 = sshll.u32 [#allocation2], 4
      %s759 = int_to_ptr.vmem [resolvable:$true] %s758
      %s760 = sshll.u32 %s7, 4
      %s761 = int_to_ptr.hbm [resolvable:$true] %s760
      %766 = dma.vmem_to_hbm [thread:$0]  %s759, 1024, %s761, [#allocation3], 128, 128, 8
    $region33: #{tpu_custom_call.1} parent=1 // pred_fallthru
      _
    // Predicated region
    $region34: #{tpu_custom_call.1} parent=1 // pred_check
      _
    $region35: #{tpu_custom_call.1} parent=1 // pred_check_branch
      %768 = sbr.rel (0) target = $region37
    $region36: #{tpu_custom_call.1} parent=1 // pred_region
      %770 = dma.done [#allocation3], 1024
    $region37: #{tpu_custom_call.1} parent=1 // pred_fallthru
      _
    %771 = vsyncpa [#allocation3], 1

</llo_original>
